<compile_context>
chip_gen: v7x
topology: tpu7x:2x2x1
jax: 0.10.0
libtpu: 0.0.40
codegen_flags: <defaults>
</compile_context>

<pallas_src>
import numpy as np
import jax
import jax.numpy as jnp
from jax.experimental import pallas as pl
from jax.experimental.pallas import tpu as pltpu

LANES = 128  # TPU lane width; last dim of every padded activation / weight block.


def _make_kernel(idx0: int, idx1: int, B: int, E: int, M: int):
    """Fused head kernel; idx0/idx1 are the static contrastive combo indices."""
    # Row offsets of the fused weight blocks inside the packed [R,128] parameter slab.
    OFF_WT = 0                      # [128,128]  transformer_proj (rows 0:input_dim)
    OFF_WG = 1 * LANES              # [128,128]  graph_proj       (rows input_dim:+dv)
    OFF_WMIX = 2 * LANES            # [256,128]  mix_linear, K-stacked for the [t|g] input
    OFF_WAGG = 4 * LANES            # [128,128]  aggregation, rows = [mean0|mean1|max0|max1]
    OFF_WC1 = 5 * LANES             # [384,128]  classifier_1, K-stacked [W1A;W1B;W1C]
    OFF_W2A = 8 * LANES             # [128,128]  classifier_2 first Linear
    OFF_W2B = 9 * LANES             # [128,128]  classifier_2 final Linear (content col 0 only)
    OFF_BIAS = 10 * LANES           # nine [1,128] zero-padded bias / LayerNorm rows
    BT, BG, BM, BAGG, LNG, LNB, B1, B2A, B2B = range(9)
    inv_m = 1.0 / M
    inv_e = 1.0 / E

    def kernel(nb_ref, d_ref, p_ref, out_ref):
        f32 = jnp.float32

        def blk(off, rows):             # static slab slice -> fused weight block
            return p_ref[off:off + rows, :]

        def bias(k):                    # [1,128] zero-padded bias / LN row
            o = OFF_BIAS + k
            return p_ref[o:o + 1, :]

        def mm(x, y):
            return jnp.dot(x, y, preferred_element_type=f32)

        lane = jax.lax.broadcasted_iota(jnp.int32, (B, LANES), 1)
        rowi = jax.lax.broadcasted_iota(jnp.int32, (B, LANES), 0)

        # ---- drug projections + mix: two fused MXU passes -------------------------------
        # d rows 0:B = drug_a features, rows B:2B = drug_b; cols [drug | dv | zeros].
        d = d_ref[...]                                                    # [2B,128]
        w_tg = jnp.concatenate([blk(OFF_WT, LANES), blk(OFF_WG, LANES)], axis=1)  # [128,256]
        b_tg = jnp.concatenate([bias(BT), bias(BG)], axis=1)                      # [1,256]
        tg = mm(d, w_tg) + b_tg                                           # [2B,256] = [t | g]
        t = tg[:, :LANES]                                                 # content cols 0:E
        g = tg[:, LANES:]
        ht = mm(tg, blk(OFF_WMIX, 2 * LANES)) + bias(BM)                  # [heads ; tails]

        # ---- PPI cell branch: the whole mean/max aggregation is ONE K=128 dot -----------
        # nb lanes: [hop0 | hop1 | hop0 | hop1 | zeros]; the duplicate lets one VPU select
        # assemble [mean0|mean1|max0|max1] with no lane movement.  Any zero-padded lanes
        # beyond 4E are harmless because the matching W_AGG rows are zero.
        nb = nb_ref[...]                                                  # [B, M, 128]
        ssum = jnp.sum(nb, axis=1) * inv_m
        smax = jnp.max(nb, axis=1)
        merged = jnp.where(lane < 2 * E, ssum, smax)                      # [B,128]
        cell = mm(merged, blk(OFF_WAGG, LANES)) + bias(BAGG)              # content cols 0:E

        feat = lane < E
        mu = jnp.sum(cell, axis=-1, keepdims=True) * inv_e                # padded cols are zero
        diff = jnp.where(feat, cell - mu, 0.0)
        var = jnp.sum(diff * diff, axis=-1, keepdims=True) * inv_e
        cell = diff * jax.lax.rsqrt(var + 1e-5) * bias(LNG) + bias(LNB)   # padded cols stay 0

        # ---- classifier: ONE stacked [3B,384] pass over rows [xc ; xc_1_raw ; xc_2_raw] --
        heads, tails = ht[0:B, :], ht[B:2 * B, :]
        f1 = (t if idx0 < 2 else g)[0:B, :]            # combo idx0 first  element (ta | ga)
        s1 = (t if idx0 % 2 == 0 else g)[B:2 * B, :]   # combo idx0 second element (tb | gb)
        f2 = (t if idx1 < 2 else g)[0:B, :]
        s2 = (t if idx1 % 2 == 0 else g)[B:2 * B, :]

        a_stack = jnp.concatenate([heads, f1, f2], axis=0)                # [3B,128]
        b_stack = jnp.concatenate([tails, s1, s2], axis=0)                # [3B,128]
        c_stack = jnp.concatenate([cell, cell, cell], axis=0)             # [3B,128]
        x_stack = jnp.concatenate([a_stack, b_stack, c_stack], axis=1)    # [3B,384]

        h1 = jnp.maximum(mm(x_stack, blk(OFF_WC1, 3 * LANES)) + bias(B1), 0.0)
        h2 = jnp.maximum(mm(h1, blk(OFF_W2A, LANES)) + bias(B2A), 0.0)
        res = mm(h2, blk(OFF_W2B, LANES)) + bias(B2B)                     # logit in col 0

        # Extract the col-0 logit explicitly (mask + lane reduce) so the result does not
        # depend on W2B/B2B being zero outside column 0.
        lane3 = jax.lax.broadcasted_iota(jnp.int32, (3 * B, LANES), 1)
        vals = jnp.sum(jnp.where(lane3 == 0, res, 0.0), axis=-1, keepdims=True)   # [3B,1]
        out_val = vals[0:B, :]
        sub_val = 0.5 * (vals[B:2 * B, :] + vals[2 * B:3 * B, :])

        # ---- contrastive cosine loss: ONE K=384 contraction ------------------------------
        dg = (((1,), (1,)), ((), ()))
        x1 = jnp.concatenate([f1, s1, cell], axis=1)                      # [B,384]
        x2 = jnp.concatenate([f2, s2, cell], axis=1)                      # [B,384]
        n1 = jnp.sum(x1 * x1, axis=-1, keepdims=True)                     # [B,1]
        n2 = jax.lax.dot_general(jnp.ones((1, 3 * LANES), f32), x2 * x2, dg,
                                 preferred_element_type=f32)              # [1,B] (avoids transpose)
        raw = jax.lax.dot_general(x1, x2, dg, preferred_element_type=f32)  # [B,B]
        # torch.norm has no eps; the tiny floor only guards an exactly-zero row.
        logits = (raw * jax.lax.rsqrt(jnp.maximum(n1, 1e-12))
                      * jax.lax.rsqrt(jnp.maximum(n2, 1e-12)))
        logits = logits - jnp.max(logits, axis=1, keepdims=True)
        lse = jnp.log(jnp.sum(jnp.exp(logits), axis=1, keepdims=True))
        ri = jax.lax.broadcasted_iota(jnp.int32, (B, B), 0)
        ci = jax.lax.broadcasted_iota(jnp.int32, (B, B), 1)
        diag = jnp.sum(jnp.where(ri == ci, logits, 0.0), axis=1, keepdims=True)
        loss = jnp.sum(lse - diag) * (1.0 / B)         # CrossEntropy(targets=arange(B), mean)

        # ---- single lane-dense output slab: col0 = out, col1 = sub_out, [0,2] = loss -----
        out_ref[...] = (jnp.where(lane == 0, out_val, 0.0)
                        + jnp.where(lane == 1, sub_val, 0.0)
                        + jnp.where((lane == 2) & (rowi == 0), loss, 0.0))

    return kernel


def pack_params(params, input_dim, E):
    """Pack all weights/biases into one [R,128] slab of fused, zero-padded blocks (built ONCE)."""
    (agg_w, agg_b, ln_g, ln_b, tp_w, tp_b, gp_w, gp_b,
     mix_w, mix_b, c1_w, c1_b, c2a_w, c2a_b, c2b_w, c2b_b) = params
    f32 = jnp.float32
    assert 4 * E <= LANES and input_dim + gp_w.shape[0] <= LANES

    def zeros(rows):
        return jnp.zeros((rows, LANES), f32)

    w_t = zeros(LANES).at[0:input_dim, 0:E].set(tp_w.astype(f32))
    w_g = zeros(LANES).at[input_dim:input_dim + gp_w.shape[0], 0:E].set(gp_w.astype(f32))

    w_mix = zeros(2 * LANES)                               # K-stacked for the [t|g] input
    w_mix = w_mix.at[0:E, 0:E].set(mix_w[:E].astype(f32))
    w_mix = w_mix.at[LANES:LANES + E, 0:E].set(mix_w[E:2 * E].astype(f32))

    # Aggregation input lanes are [mean0|mean1|max0|max1]; agg_w rows are [mean0|max0|mean1|max1].
    w_agg = zeros(LANES)
    w_agg = w_agg.at[0 * E:1 * E, 0:E].set(agg_w[0 * E:1 * E].astype(f32))   # mean hop0
    w_agg = w_agg.at[1 * E:2 * E, 0:E].set(agg_w[2 * E:3 * E].astype(f32))   # mean hop1
    w_agg = w_agg.at[2 * E:3 * E, 0:E].set(agg_w[1 * E:2 * E].astype(f32))   # max  hop0
    w_agg = w_agg.at[3 * E:4 * E, 0:E].set(agg_w[3 * E:4 * E].astype(f32))   # max  hop1

    w_c1 = zeros(3 * LANES)                                # K-stacked [W1A;W1B;W1C]
    w_c1 = w_c1.at[0:E, 0:2 * E].set(c1_w[0:E].astype(f32))
    w_c1 = w_c1.at[LANES:LANES + E, 0:2 * E].set(c1_w[E:2 * E].astype(f32))
    w_c1 = w_c1.at[2 * LANES:2 * LANES + E, 0:2 * E].set(c1_w[2 * E:3 * E].astype(f32))

    w_2a = zeros(LANES).at[0:2 * E, 0:E].set(c2a_w.astype(f32))
    w_2b = zeros(LANES).at[0:E, 0:1].set(c2b_w.astype(f32))   # content in column 0 only

    def row(v):
        return zeros(1).at[0:1, 0:v.shape[1]].set(v.astype(f32))

    biases = [row(tp_b), row(gp_b), row(mix_b), row(agg_b),
              row(ln_g), row(ln_b), row(c1_b), row(c2a_b), row(c2b_b)]

    slab = jnp.concatenate([w_t, w_g, w_mix, w_agg, w_c1, w_2a, w_2b] + biases, axis=0)
    pad = (-slab.shape[0]) % 8
    if pad:
        slab = jnp.concatenate([slab, jnp.zeros((pad, LANES), jnp.float32)], axis=0)
    return slab


def pack_inputs(nb0, nb1, drug_a, dv_a, drug_b, dv_b):
    """Pack per-forward activations.

    Neighbor slab [B,M,128]: lanes [hop0|hop1|hop0|hop1|zeros] (duplicate enables the single
    aggregation dot).  Drug slab [2B,128]: rows 0:B = [drug_a|dv_a|0], rows B:2B = [drug_b|dv_b|0].
    """
    B, M, E = nb0.shape
    assert 4 * E <= LANES
    assert B % 8 == 0, "row-concat alignment: B must be a multiple of 8 sublanes"
    two = jnp.concatenate([nb0, nb1], axis=-1).astype(jnp.float32)     # [B,M,2E]
    nb = jnp.concatenate([two, two], axis=-1)                          # [B,M,4E]
    pad = LANES - nb.shape[-1]
    if pad:
        nb = jnp.concatenate([nb, jnp.zeros((B, M, pad), jnp.float32)], axis=-1)

    din = drug_a.shape[1] + dv_a.shape[1]
    assert din <= LANES
    z = jnp.zeros((B, LANES - din), jnp.float32)
    d = jnp.concatenate(
        [jnp.concatenate([drug_a, dv_a, z], axis=1),
         jnp.concatenate([drug_b, dv_b, z], axis=1)], axis=0).astype(jnp.float32)
    return nb, d


def run_head(nb_packed, d_packed, p_slab, E, idx0, idx1):
    """Single fused-forward kernel call on pre-packed slabs."""
    B, M, _ = nb_packed.shape
    flops = int(2 * (2 * B * 128 * 256 + 2 * B * 256 * 128 + B * 128 * 128
                     + 3 * B * 384 * 128 + 2 * (3 * B * 128 * 128)
                     + B * 384 * B + 384 * B))
    bytes_accessed = int(4 * (nb_packed.size + d_packed.size + p_slab.size + B * LANES))
    vmem = pl.BlockSpec(memory_space=pltpu.MemorySpace.VMEM)
    packed = pl.pallas_call(
        _make_kernel(int(idx0), int(idx1), B, E, M),
        out_shape=jax.ShapeDtypeStruct((B, LANES), jnp.float32),
        in_specs=[vmem, vmem, vmem],
        out_specs=vmem,
        cost_estimate=pl.CostEstimate(flops=flops, transcendentals=B * B + 6 * B,
                                      bytes_accessed=bytes_accessed),
    )(nb_packed, d_packed, p_slab)
    return packed[:, 0:1], packed[0, 2], packed[:, 1:2]


def reference(nb0, nb1, drug_a, drug_b, dv_a, dv_b, params, idx0, idx1):
    """Pure-JAX reference mirroring the PyTorch forward (eval mode)."""
    (agg_w, agg_b, ln_g, ln_b, tp_w, tp_b, gp_w, gp_b,
     mix_w, mix_b, c1_w, c1_b, c2a_w, c2a_b, c2b_w, c2b_b) = params
    hi = jax.lax.Precision.HIGHEST

    def lin(x, w, b):
        return jnp.dot(x, w, precision=hi) + b

    h0 = jnp.concatenate([nb0.mean(1), nb0.max(1)], axis=-1)
    h1 = jnp.concatenate([nb1.mean(1), nb1.max(1)], axis=-1)
    cell = lin(jnp.concatenate([h0, h1], axis=-1), agg_w, agg_b)
    mu = cell.mean(-1, keepdims=True)
    var = ((cell - mu) ** 2).mean(-1, keepdims=True)
    cell = (cell - mu) / jnp.sqrt(var + 1e-5) * ln_g + ln_b

    ta = lin(drug_a, tp_w, tp_b); tb = lin(drug_b, tp_w, tp_b)
    ga = lin(dv_a, gp_w, gp_b);   gb = lin(dv_b, gp_w, gp_b)
    heads = lin(jnp.concatenate([ta, ga], -1), mix_w, mix_b)
    tails = lin(jnp.concatenate([tb, gb], -1), mix_w, mix_b)

    def classify(x):
        h = jax.nn.relu(lin(x, c1_w, c1_b))
        h = jax.nn.relu(lin(h, c2a_w, c2a_b))
        return lin(h, c2b_w, c2b_b)

    out = classify(jnp.concatenate([heads, tails, cell], -1))
    combos = [[ta, tb], [ta, gb], [ga, tb], [ga, gb]]
    x1 = jnp.concatenate(combos[idx0] + [cell], -1)
    x2 = jnp.concatenate(combos[idx1] + [cell], -1)
    sub = 0.5 * (classify(x1) + classify(x2))

    an = x1 / jnp.linalg.norm(x1, axis=-1, keepdims=True)
    po = x2 / jnp.linalg.norm(x2, axis=-1, keepdims=True)
    logits = jnp.dot(an, po.T, precision=hi)
    logits = logits - logits.max(axis=1, keepdims=True)
    lse = jnp.log(jnp.sum(jnp.exp(logits), axis=1))
    loss = jnp.mean(lse - jnp.diagonal(logits))
    return out, loss, sub


if __name__ == "__main__":
    B = 8
    input_dim = 64
    dv_input_dim = 48
    E = 32                 # inner_dim == emb_dim
    n_hop = 2
    n_memory = 16
    protein_num = 100
    num_cells = 5

    key = jax.random.PRNGKey(0)
    ks = iter(jax.random.split(key, 32))

    def rand(shape, scale=0.1):
        return (scale * jax.random.normal(next(ks), shape)).astype(jnp.float32)

    # PyTorch Linear weights pre-transposed to [in, out]; biases as [1, out].
    protein_embedding = rand((protein_num, E), 1.0)
    agg_w, agg_b = rand((4 * E, E)), rand((1, E))
    ln_g = jnp.ones((1, E), jnp.float32)
    ln_b = jnp.zeros((1, E), jnp.float32)
    tp_w, tp_b = rand((input_dim, E)), rand((1, E))
    gp_w, gp_b = rand((dv_input_dim, E)), rand((1, E))
    mix_w, mix_b = rand((2 * E, E)), rand((1, E))
    c1_w, c1_b = rand((3 * E, 2 * E)), rand((1, 2 * E))
    c2a_w, c2a_b = rand((2 * E, E)), rand((1, E))
    c2b_w, c2b_b = rand((E, 1)), rand((1, 1))
    params = (agg_w, agg_b, ln_g, ln_b, tp_w, tp_b, gp_w, gp_b,
              mix_w, mix_b, c1_w, c1_b, c2a_w, c2a_b, c2b_w, c2b_b)

    drug_a = rand((B, input_dim), 1.0)
    drug_b = rand((B, input_dim), 1.0)
    dv_drug_a = rand((B, dv_input_dim), 1.0)
    dv_drug_b = rand((B, dv_input_dim), 1.0)
    cells = jax.random.randint(next(ks), (B, 1), 0, num_cells)

    # TODO(synk): DataPPI neighbor loader replaced by a deterministic synthetic neighbor table.
    cell_neighbor_table = jax.random.randint(
        next(ks), (num_cells, n_hop, n_memory), 0, protein_num)

    # JAX glue: neighbor-set lookup + embedding gather (data-dependent; stays outside the kernel).
    neigh = cell_neighbor_table[cells[:, 0]]              # [B, n_hop, n_memory]
    nb0 = protein_embedding[neigh[:, 0]]                  # [B, n_memory, E]
    nb1 = protein_embedding[neigh[:, 1]]

    # Forward-time random combo choice (fixed seed -> static ints at trace time).
    rng = np.random.default_rng(0)
    combo_idxes = rng.choice(4, size=2, replace=False, p=[0.25] * 4)
    assert combo_idxes[0] != combo_idxes[1]
    i0, i1 = int(combo_idxes[0]), int(combo_idxes[1])

    # Parameter slab is packed ONCE and reused; per-forward packing is only the two input slabs.
    p_slab = jax.block_until_ready(pack_params(params, input_dim, E))
    nb_packed, d_packed = pack_inputs(nb0, nb1, drug_a, dv_drug_a, drug_b, dv_drug_b)

    out, cosine, sub_out = run_head(nb_packed, d_packed, p_slab, E, i0, i1)
    jax.block_until_ready((out, cosine, sub_out))

    r_out, r_loss, r_sub = reference(nb0, nb1, drug_a, drug_b, dv_drug_a, dv_drug_b,
                                     params, i0, i1)
    assert out.shape == (B, 1) and sub_out.shape == (B, 1)
    assert bool(jnp.isfinite(out).all()) and bool(jnp.isfinite(sub_out).all())
    assert bool(jnp.isfinite(cosine))
    assert bool(jnp.allclose(out, r_out, rtol=5e-3, atol=5e-3))
    assert bool(jnp.allclose(sub_out, r_sub, rtol=5e-3, atol=5e-3))
    assert bool(jnp.allclose(cosine, r_loss, rtol=5e-3, atol=5e-3))
    print("KERNEL_OK")
</pallas_src>

<mosaic_0001>
module attributes {stable_mosaic.version = 11 : i64} {
  func.func @kernel(%arg0: memref<8x16x128xf32, #tpu.memory_space<vmem>>, %arg1: memref<16x128xf32, #tpu.memory_space<vmem>>, %arg2: memref<1296x128xf32, #tpu.memory_space<vmem>>, %arg3: memref<8x128xf32, #tpu.memory_space<vmem>>) attributes {dimension_semantics = [], scalar_prefetch = 0 : i64, scratch_operands = 0 : i64, tpu.core_type = #tpu.core_type<tc>} {
    %0 = tpu.iota {dimensions = array<i32: 1>} : vector<8x128xi32>
    %1 = tpu.iota {dimensions = array<i32: 0>} : vector<8x128xi32>
    %c0 = arith.constant 0 : index
    %c0_0 = arith.constant 0 : index
    %2 = vector.load %arg1[%c0, %c0_0] : memref<16x128xf32, #tpu.memory_space<vmem>>, vector<16x128xf32>
    %c0_1 = arith.constant 0 : index
    %c0_2 = arith.constant 0 : index
    %3 = vector.load %arg2[%c0_1, %c0_2] : memref<1296x128xf32, #tpu.memory_space<vmem>>, vector<128x128xf32>
    %c128 = arith.constant 128 : index
    %c0_3 = arith.constant 0 : index
    %4 = vector.load %arg2[%c128, %c0_3] : memref<1296x128xf32, #tpu.memory_space<vmem>>, vector<128x128xf32>
    %5 = tpu.concatenate %3, %4 in 1 : vector<128x128xf32>, vector<128x128xf32> -> vector<128x256xf32>
    %c1280 = arith.constant 1280 : index
    %c0_4 = arith.constant 0 : index
    %6 = vector.load %arg2[%c1280, %c0_4] : memref<1296x128xf32, #tpu.memory_space<vmem>>, vector<1x128xf32>
    %c1281 = arith.constant 1281 : index
    %c0_5 = arith.constant 0 : index
    %7 = vector.load %arg2[%c1281, %c0_5] : memref<1296x128xf32, #tpu.memory_space<vmem>>, vector<1x128xf32>
    %8 = tpu.concatenate %6, %7 in 1 : vector<1x128xf32>, vector<1x128xf32> -> vector<1x256xf32>
    %cst = arith.constant dense<0.000000e+00> : vector<16x256xf32>
    %9 = tpu.matmul %2, %5, %cst {dimension_numbers = #tpu.dot_dimension_numbers<[1], [0], [0], [1], [0, 0, 1, 1], [], []>} : vector<16x128xf32>, vector<128x256xf32>, vector<16x256xf32> -> vector<16x256xf32>
    %10 = vector.broadcast %8 : vector<1x256xf32> to vector<16x256xf32>
    %11 = arith.addf %9, %10 : vector<16x256xf32>
    %12 = vector.extract_strided_slice %11 {offsets = [0, 0], sizes = [16, 128], strides = [1, 1]} : vector<16x256xf32> to vector<16x128xf32>
    %13 = vector.extract_strided_slice %11 {offsets = [0, 128], sizes = [16, 128], strides = [1, 1]} : vector<16x256xf32> to vector<16x128xf32>
    %c256 = arith.constant 256 : index
    %c0_6 = arith.constant 0 : index
    %14 = vector.load %arg2[%c256, %c0_6] : memref<1296x128xf32, #tpu.memory_space<vmem>>, vector<256x128xf32>
    %cst_7 = arith.constant dense<0.000000e+00> : vector<16x128xf32>
    %15 = tpu.matmul %11, %14, %cst_7 {dimension_numbers = #tpu.dot_dimension_numbers<[1], [0], [0], [1], [0, 0, 1, 1], [], []>} : vector<16x256xf32>, vector<256x128xf32>, vector<16x128xf32> -> vector<16x128xf32>
    %c1282 = arith.constant 1282 : index
    %c0_8 = arith.constant 0 : index
    %16 = vector.load %arg2[%c1282, %c0_8] : memref<1296x128xf32, #tpu.memory_space<vmem>>, vector<1x128xf32>
    %17 = vector.broadcast %16 : vector<1x128xf32> to vector<16x128xf32>
    %18 = arith.addf %15, %17 : vector<16x128xf32>
    %c0_9 = arith.constant 0 : index
    %c0_10 = arith.constant 0 : index
    %c0_11 = arith.constant 0 : index
    %19 = vector.load %arg0[%c0_9, %c0_10, %c0_11] : memref<8x16x128xf32, #tpu.memory_space<vmem>>, vector<8x16x128xf32>
    %cst_12 = arith.constant dense<0.000000e+00> : vector<8x128xf32>
    %20 = vector.multi_reduction <add>, %19, %cst_12 [1] : vector<8x16x128xf32> to vector<8x128xf32>
    %cst_13 = arith.constant 6.250000e-02 : f32
    %21 = vector.broadcast %cst_13 : f32 to vector<8x128xf32>
    %22 = arith.mulf %20, %21 : vector<8x128xf32>
    %cst_14 = arith.constant dense<0xFF800000> : vector<8x128xf32>
    %23 = vector.multi_reduction <maximumf>, %19, %cst_14 [1] : vector<8x16x128xf32> to vector<8x128xf32>
    %c64_i32 = arith.constant 64 : i32
    %24 = vector.broadcast %c64_i32 : i32 to vector<8x128xi32>
    %25 = arith.cmpi slt, %0, %24 : vector<8x128xi32>
    %26 = arith.select %25, %22, %23 : vector<8x128xi1>, vector<8x128xf32>
    %c512 = arith.constant 512 : index
    %c0_15 = arith.constant 0 : index
    %27 = vector.load %arg2[%c512, %c0_15] : memref<1296x128xf32, #tpu.memory_space<vmem>>, vector<128x128xf32>
    %cst_16 = arith.constant dense<0.000000e+00> : vector<8x128xf32>
    %28 = tpu.matmul %26, %27, %cst_16 {dimension_numbers = #tpu.dot_dimension_numbers<[1], [0], [0], [1], [0, 0, 1, 1], [], []>} : vector<8x128xf32>, vector<128x128xf32>, vector<8x128xf32> -> vector<8x128xf32>
    %c1283 = arith.constant 1283 : index
    %c0_17 = arith.constant 0 : index
    %29 = vector.load %arg2[%c1283, %c0_17] : memref<1296x128xf32, #tpu.memory_space<vmem>>, vector<1x128xf32>
    %30 = vector.broadcast %29 : vector<1x128xf32> to vector<8x128xf32>
    %31 = arith.addf %28, %30 : vector<8x128xf32>
    %c32_i32 = arith.constant 32 : i32
    %32 = vector.broadcast %c32_i32 : i32 to vector<8x128xi32>
    %33 = arith.cmpi slt, %0, %32 : vector<8x128xi32>
    %cst_18 = arith.constant dense<0.000000e+00> : vector<8xf32>
    %34 = vector.multi_reduction <add>, %31, %cst_18 [1] : vector<8x128xf32> to vector<8xf32>
    %35 = vector.shape_cast %34 : vector<8xf32> to vector<8x1xf32>
    %cst_19 = arith.constant 3.125000e-02 : f32
    %36 = vector.broadcast %cst_19 : f32 to vector<8x1xf32>
    %37 = arith.mulf %35, %36 : vector<8x1xf32>
    %38 = vector.broadcast %37 : vector<8x1xf32> to vector<8x128xf32>
    %39 = arith.subf %31, %38 : vector<8x128xf32>
    %cst_20 = arith.constant 0.000000e+00 : f32
    %40 = vector.broadcast %cst_20 : f32 to vector<8x128xf32>
    %41 = arith.select %33, %39, %40 : vector<8x128xi1>, vector<8x128xf32>
    %42 = arith.mulf %41, %41 : vector<8x128xf32>
    %cst_21 = arith.constant dense<0.000000e+00> : vector<8xf32>
    %43 = vector.multi_reduction <add>, %42, %cst_21 [1] : vector<8x128xf32> to vector<8xf32>
    %44 = vector.shape_cast %43 : vector<8xf32> to vector<8x1xf32>
    %cst_22 = arith.constant 3.125000e-02 : f32
    %45 = vector.broadcast %cst_22 : f32 to vector<8x1xf32>
    %46 = arith.mulf %44, %45 : vector<8x1xf32>
    %cst_23 = arith.constant 9.99999974E-6 : f32
    %47 = vector.broadcast %cst_23 : f32 to vector<8x1xf32>
    %48 = arith.addf %46, %47 : vector<8x1xf32>
    %49 = math.rsqrt %48 : vector<8x1xf32>
    %50 = vector.broadcast %49 : vector<8x1xf32> to vector<8x128xf32>
    %51 = arith.mulf %41, %50 : vector<8x128xf32>
    %c1284 = arith.constant 1284 : index
    %c0_24 = arith.constant 0 : index
    %52 = vector.load %arg2[%c1284, %c0_24] : memref<1296x128xf32, #tpu.memory_space<vmem>>, vector<1x128xf32>
    %53 = vector.broadcast %52 : vector<1x128xf32> to vector<8x128xf32>
    %54 = arith.mulf %51, %53 : vector<8x128xf32>
    %c1285 = arith.constant 1285 : index
    %c0_25 = arith.constant 0 : index
    %55 = vector.load %arg2[%c1285, %c0_25] : memref<1296x128xf32, #tpu.memory_space<vmem>>, vector<1x128xf32>
    %56 = vector.broadcast %55 : vector<1x128xf32> to vector<8x128xf32>
    %57 = arith.addf %54, %56 : vector<8x128xf32>
    %58 = vector.extract_strided_slice %18 {offsets = [0, 0], sizes = [8, 128], strides = [1, 1]} : vector<16x128xf32> to vector<8x128xf32>
    %59 = vector.extract_strided_slice %18 {offsets = [8, 0], sizes = [8, 128], strides = [1, 1]} : vector<16x128xf32> to vector<8x128xf32>
    %60 = vector.extract_strided_slice %13 {offsets = [0, 0], sizes = [8, 128], strides = [1, 1]} : vector<16x128xf32> to vector<8x128xf32>
    %61 = vector.extract_strided_slice %12 {offsets = [8, 0], sizes = [8, 128], strides = [1, 1]} : vector<16x128xf32> to vector<8x128xf32>
    %62 = vector.extract_strided_slice %12 {offsets = [0, 0], sizes = [8, 128], strides = [1, 1]} : vector<16x128xf32> to vector<8x128xf32>
    %63 = vector.extract_strided_slice %13 {offsets = [8, 0], sizes = [8, 128], strides = [1, 1]} : vector<16x128xf32> to vector<8x128xf32>
    %64 = tpu.concatenate %58, %60, %62 in 0 : vector<8x128xf32>, vector<8x128xf32>, vector<8x128xf32> -> vector<24x128xf32>
    %65 = tpu.concatenate %59, %61, %63 in 0 : vector<8x128xf32>, vector<8x128xf32>, vector<8x128xf32> -> vector<24x128xf32>
    %66 = tpu.concatenate %57, %57, %57 in 0 : vector<8x128xf32>, vector<8x128xf32>, vector<8x128xf32> -> vector<24x128xf32>
    %67 = tpu.concatenate %64, %65, %66 in 1 : vector<24x128xf32>, vector<24x128xf32>, vector<24x128xf32> -> vector<24x384xf32>
    %c640 = arith.constant 640 : index
    %c0_26 = arith.constant 0 : index
    %68 = vector.load %arg2[%c640, %c0_26] : memref<1296x128xf32, #tpu.memory_space<vmem>>, vector<384x128xf32>
    %cst_27 = arith.constant dense<0.000000e+00> : vector<24x128xf32>
    %69 = tpu.matmul %67, %68, %cst_27 {dimension_numbers = #tpu.dot_dimension_numbers<[1], [0], [0], [1], [0, 0, 1, 1], [], []>} : vector<24x384xf32>, vector<384x128xf32>, vector<24x128xf32> -> vector<24x128xf32>
    %c1286 = arith.constant 1286 : index
    %c0_28 = arith.constant 0 : index
    %70 = vector.load %arg2[%c1286, %c0_28] : memref<1296x128xf32, #tpu.memory_space<vmem>>, vector<1x128xf32>
    %71 = vector.broadcast %70 : vector<1x128xf32> to vector<24x128xf32>
    %72 = arith.addf %69, %71 : vector<24x128xf32>
    %cst_29 = arith.constant 0.000000e+00 : f32
    %73 = vector.broadcast %cst_29 : f32 to vector<24x128xf32>
    %74 = arith.maximumf %72, %73 : vector<24x128xf32>
    %c1024 = arith.constant 1024 : index
    %c0_30 = arith.constant 0 : index
    %75 = vector.load %arg2[%c1024, %c0_30] : memref<1296x128xf32, #tpu.memory_space<vmem>>, vector<128x128xf32>
    %cst_31 = arith.constant dense<0.000000e+00> : vector<24x128xf32>
    %76 = tpu.matmul %74, %75, %cst_31 {dimension_numbers = #tpu.dot_dimension_numbers<[1], [0], [0], [1], [0, 0, 1, 1], [], []>} : vector<24x128xf32>, vector<128x128xf32>, vector<24x128xf32> -> vector<24x128xf32>
    %c1287 = arith.constant 1287 : index
    %c0_32 = arith.constant 0 : index
    %77 = vector.load %arg2[%c1287, %c0_32] : memref<1296x128xf32, #tpu.memory_space<vmem>>, vector<1x128xf32>
    %78 = vector.broadcast %77 : vector<1x128xf32> to vector<24x128xf32>
    %79 = arith.addf %76, %78 : vector<24x128xf32>
    %cst_33 = arith.constant 0.000000e+00 : f32
    %80 = vector.broadcast %cst_33 : f32 to vector<24x128xf32>
    %81 = arith.maximumf %79, %80 : vector<24x128xf32>
    %c1152 = arith.constant 1152 : index
    %c0_34 = arith.constant 0 : index
    %82 = vector.load %arg2[%c1152, %c0_34] : memref<1296x128xf32, #tpu.memory_space<vmem>>, vector<128x128xf32>
    %cst_35 = arith.constant dense<0.000000e+00> : vector<24x128xf32>
    %83 = tpu.matmul %81, %82, %cst_35 {dimension_numbers = #tpu.dot_dimension_numbers<[1], [0], [0], [1], [0, 0, 1, 1], [], []>} : vector<24x128xf32>, vector<128x128xf32>, vector<24x128xf32> -> vector<24x128xf32>
    %c1288 = arith.constant 1288 : index
    %c0_36 = arith.constant 0 : index
    %84 = vector.load %arg2[%c1288, %c0_36] : memref<1296x128xf32, #tpu.memory_space<vmem>>, vector<1x128xf32>
    %85 = vector.broadcast %84 : vector<1x128xf32> to vector<24x128xf32>
    %86 = arith.addf %83, %85 : vector<24x128xf32>
    %87 = tpu.iota {dimensions = array<i32: 1>} : vector<24x128xi32>
    %c0_i32 = arith.constant 0 : i32
    %88 = vector.broadcast %c0_i32 : i32 to vector<24x128xi32>
    %89 = arith.cmpi eq, %87, %88 : vector<24x128xi32>
    %cst_37 = arith.constant 0.000000e+00 : f32
    %90 = vector.broadcast %cst_37 : f32 to vector<24x128xf32>
    %91 = arith.select %89, %86, %90 : vector<24x128xi1>, vector<24x128xf32>
    %cst_38 = arith.constant dense<0.000000e+00> : vector<24xf32>
    %92 = vector.multi_reduction <add>, %91, %cst_38 [1] : vector<24x128xf32> to vector<24xf32>
    %93 = vector.shape_cast %92 : vector<24xf32> to vector<24x1xf32>
    %94 = vector.extract_strided_slice %93 {offsets = [0, 0], sizes = [8, 1], strides = [1, 1]} : vector<24x1xf32> to vector<8x1xf32>
    %95 = vector.extract_strided_slice %93 {offsets = [8, 0], sizes = [8, 1], strides = [1, 1]} : vector<24x1xf32> to vector<8x1xf32>
    %96 = vector.extract_strided_slice %93 {offsets = [16, 0], sizes = [8, 1], strides = [1, 1]} : vector<24x1xf32> to vector<8x1xf32>
    %97 = arith.addf %95, %96 : vector<8x1xf32>
    %cst_39 = arith.constant 5.000000e-01 : f32
    %98 = vector.broadcast %cst_39 : f32 to vector<8x1xf32>
    %99 = arith.mulf %98, %97 : vector<8x1xf32>
    %100 = tpu.concatenate %60, %61, %57 in 1 : vector<8x128xf32>, vector<8x128xf32>, vector<8x128xf32> -> vector<8x384xf32>
    %101 = tpu.concatenate %62, %63, %57 in 1 : vector<8x128xf32>, vector<8x128xf32>, vector<8x128xf32> -> vector<8x384xf32>
    %102 = arith.mulf %100, %100 : vector<8x384xf32>
    %cst_40 = arith.constant dense<0.000000e+00> : vector<8xf32>
    %103 = vector.multi_reduction <add>, %102, %cst_40 [1] : vector<8x384xf32> to vector<8xf32>
    %104 = vector.shape_cast %103 : vector<8xf32> to vector<8x1xf32>
    %cst_41 = arith.constant 1.000000e+00 : f32
    %105 = vector.broadcast %cst_41 : f32 to vector<1x384xf32>
    %106 = arith.mulf %101, %101 : vector<8x384xf32>
    %cst_42 = arith.constant dense<0.000000e+00> : vector<1x8xf32>
    %107 = tpu.matmul %105, %106, %cst_42 {dimension_numbers = #tpu.dot_dimension_numbers<[1], [1], [0], [0], [0, 0, 1, 0], [], []>} : vector<1x384xf32>, vector<8x384xf32>, vector<1x8xf32> -> vector<1x8xf32>
    %cst_43 = arith.constant dense<0.000000e+00> : vector<8x8xf32>
    %108 = tpu.matmul %100, %101, %cst_43 {dimension_numbers = #tpu.dot_dimension_numbers<[1], [1], [0], [0], [0, 0, 1, 0], [], []>} : vector<8x384xf32>, vector<8x384xf32>, vector<8x8xf32> -> vector<8x8xf32>
    %cst_44 = arith.constant 9.99999996E-13 : f32
    %109 = vector.broadcast %cst_44 : f32 to vector<8x1xf32>
    %110 = arith.maximumf %104, %109 : vector<8x1xf32>
    %111 = math.rsqrt %110 : vector<8x1xf32>
    %112 = vector.broadcast %111 : vector<8x1xf32> to vector<8x8xf32>
    %113 = arith.mulf %108, %112 : vector<8x8xf32>
    %cst_45 = arith.constant 9.99999996E-13 : f32
    %114 = vector.broadcast %cst_45 : f32 to vector<1x8xf32>
    %115 = arith.maximumf %107, %114 : vector<1x8xf32>
    %116 = math.rsqrt %115 : vector<1x8xf32>
    %117 = vector.broadcast %116 : vector<1x8xf32> to vector<8x8xf32>
    %118 = arith.mulf %113, %117 : vector<8x8xf32>
    %cst_46 = arith.constant dense<0xFF800000> : vector<8xf32>
    %119 = vector.multi_reduction <maximumf>, %118, %cst_46 [1] : vector<8x8xf32> to vector<8xf32>
    %120 = vector.shape_cast %119 : vector<8xf32> to vector<8x1xf32>
    %121 = vector.broadcast %120 : vector<8x1xf32> to vector<8x8xf32>
    %122 = arith.subf %118, %121 : vector<8x8xf32>
    %123 = math.exp %122 : vector<8x8xf32>
    %cst_47 = arith.constant dense<0.000000e+00> : vector<8xf32>
    %124 = vector.multi_reduction <add>, %123, %cst_47 [1] : vector<8x8xf32> to vector<8xf32>
    %125 = vector.shape_cast %124 : vector<8xf32> to vector<8x1xf32>
    %126 = math.log %125 : vector<8x1xf32>
    %127 = tpu.iota {dimensions = array<i32: 0>} : vector<8x8xi32>
    %128 = tpu.iota {dimensions = array<i32: 1>} : vector<8x8xi32>
    %129 = arith.cmpi eq, %127, %128 : vector<8x8xi32>
    %cst_48 = arith.constant 0.000000e+00 : f32
    %130 = vector.broadcast %cst_48 : f32 to vector<8x8xf32>
    %131 = arith.select %129, %122, %130 : vector<8x8xi1>, vector<8x8xf32>
    %cst_49 = arith.constant dense<0.000000e+00> : vector<8xf32>
    %132 = vector.multi_reduction <add>, %131, %cst_49 [1] : vector<8x8xf32> to vector<8xf32>
    %133 = vector.shape_cast %132 : vector<8xf32> to vector<8x1xf32>
    %134 = arith.subf %126, %133 : vector<8x1xf32>
    %135 = vector.shape_cast %134 : vector<8x1xf32> to vector<1x8x1xf32>
    %cst_50 = arith.constant dense<0.000000e+00> : vector<1xf32>
    %136 = vector.multi_reduction <add>, %135, %cst_50 [1, 2] : vector<1x8x1xf32> to vector<1xf32>
    %137 = vector.shape_cast %136 : vector<1xf32> to vector<1x1x1xf32>
    %138 = vector.extract %137[0, 0, 0] : f32 from vector<1x1x1xf32>
    %cst_51 = arith.constant 1.250000e-01 : f32
    %139 = arith.mulf %138, %cst_51 : f32
    %c0_i32_52 = arith.constant 0 : i32
    %140 = vector.broadcast %c0_i32_52 : i32 to vector<8x128xi32>
    %141 = arith.cmpi eq, %0, %140 : vector<8x128xi32>
    %cst_53 = arith.constant 0.000000e+00 : f32
    %142 = vector.shape_cast %94 : vector<8x1xf32> to vector<8x1xf32>
    %143 = vector.broadcast %142 : vector<8x1xf32> to vector<8x128xf32>
    %144 = vector.broadcast %cst_53 : f32 to vector<8x128xf32>
    %145 = arith.select %141, %143, %144 : vector<8x128xi1>, vector<8x128xf32>
    %c1_i32 = arith.constant 1 : i32
    %146 = vector.broadcast %c1_i32 : i32 to vector<8x128xi32>
    %147 = arith.cmpi eq, %0, %146 : vector<8x128xi32>
    %cst_54 = arith.constant 0.000000e+00 : f32
    %148 = vector.shape_cast %99 : vector<8x1xf32> to vector<8x1xf32>
    %149 = vector.broadcast %148 : vector<8x1xf32> to vector<8x128xf32>
    %150 = vector.broadcast %cst_54 : f32 to vector<8x128xf32>
    %151 = arith.select %147, %149, %150 : vector<8x128xi1>, vector<8x128xf32>
    %152 = arith.addf %145, %151 : vector<8x128xf32>
    %c2_i32 = arith.constant 2 : i32
    %153 = vector.broadcast %c2_i32 : i32 to vector<8x128xi32>
    %154 = arith.cmpi eq, %0, %153 : vector<8x128xi32>
    %c0_i32_55 = arith.constant 0 : i32
    %155 = vector.broadcast %c0_i32_55 : i32 to vector<8x128xi32>
    %156 = arith.cmpi eq, %1, %155 : vector<8x128xi32>
    %157 = arith.andi %154, %156 : vector<8x128xi1>
    %cst_56 = arith.constant 0.000000e+00 : f32
    %158 = vector.broadcast %139 : f32 to vector<8x128xf32>
    %159 = vector.broadcast %cst_56 : f32 to vector<8x128xf32>
    %160 = arith.select %157, %158, %159 : vector<8x128xi1>, vector<8x128xf32>
    %161 = arith.addf %152, %160 : vector<8x128xf32>
    %c0_57 = arith.constant 0 : index
    %c0_58 = arith.constant 0 : index
    %162 = vector.load %arg3[%c0_57, %c0_58] : memref<8x128xf32, #tpu.memory_space<vmem>>, vector<8x128xf32>
    tpu.vector_store %arg3[%c0_57, %c0_58], %161 {strides = array<i32>} : memref<8x128xf32, #tpu.memory_space<vmem>>, vector<8x128xf32>,
    return
  }
}

</mosaic_0001>

<llo_original>
// kernel: tpu_custom_call.1
$region0: #{tpu_custom_call.1}
  #allocation0 [shape = 'u32[]', space=smem, size = 0x4, offset = 0x4, fixed_abs, tag = 'smem constant byte address 0x4 - core index']
  #allocation1 [shape = 'u32[144,128]{1,0:T(1,128)}', space=vmem, size = 0x12000, scoped, tag = 'internal scratch']
  %s0 = inlined_call_operand.hbm [shape: f32[8,16,128], index: 0, kind: input, shape index: {}]
  %s1 = inlined_call_operand.hbm [shape: f32[16,128], index: 1, kind: input, shape index: {}]
  %s2 = inlined_call_operand.hbm [shape: f32[1296,128], index: 2, kind: input, shape index: {}]
  %s3 = inlined_call_operand.hbm [shape: f32[8,128], index: 3, kind: output, shape index: {}]
  %s4 = sld [smem:[#allocation0]]
  $region34: #{tpu_custom_call.1} parent=0
    _
  %s6 = ssub.s32 1, %s4
  %s7 = scalar_select 0, %s6, %s4
  $region1: #{tpu_custom_call.1} parent=0
    #allocation2 [shape = 'u8[65536]{0}', space=vmem, size = 0x10000, scoped, tag = 'input window, operand 0, single buffered']
    #allocation3 [shape = 's32[1]{0}', space=sflag, size = 0x4, scoped, tag = 'scoped memory for tpu_custom_call.1']
    #allocation4 [shape = 's32[1]{0}', space=sflag, size = 0x4, scoped, tag = 'scoped memory for tpu_custom_call.1']
    #allocation5 [shape = 'u8[8192]{0}', space=vmem, size = 0x2000, scoped, tag = 'input window, operand 1, single buffered']
    #allocation6 [shape = 's32[1]{0}', space=sflag, size = 0x4, scoped, tag = 'scoped memory for tpu_custom_call.1']
    #allocation7 [shape = 'u8[663552]{0}', space=vmem, size = 0xa2000, scoped, tag = 'input window, operand 2, single buffered']
    #allocation8 [shape = 'u8[4096]{0}', space=vmem, size = 0x1000, scoped, tag = 'output window, operand 0, single buffered']
    %8 = vsyncpa [#allocation3], 0
    %9 = vsyncpa [#allocation6], 0
    %10 = vsyncpa [#allocation4], 0
    // Predicated region
    $region2: #{tpu_custom_call.1} parent=1 // pred_check
      _
    $region3: #{tpu_custom_call.1} parent=1 // pred_check_branch
      %12 = sbr.rel (0) target = $region5
    $region4: #{tpu_custom_call.1} parent=1 // pred_region
      %s14 = ssub.s32 2048, 2048
      %15 = vsyncadd [#allocation3], %s14
      %s16 = sshll.u32 [#allocation2], 4
      %s17 = int_to_ptr.vmem [resolvable:$true] %s16
      %22 = dma.hbm_to_vmem [thread:$0]  %s0, 2048, %s17, [#allocation3], 128, 128, 8
    $region5: #{tpu_custom_call.1} parent=1 // pred_fallthru
      _
    // Predicated region
    $region6: #{tpu_custom_call.1} parent=1 // pred_check
      _
    $region7: #{tpu_custom_call.1} parent=1 // pred_check_branch
      %24 = sbr.rel (0) target = $region9
    $region8: #{tpu_custom_call.1} parent=1 // pred_region
      %s26 = ssub.s32 256, 256
      %27 = vsyncadd [#allocation6], %s26
      %s28 = sshll.u32 [#allocation5], 4
      %s29 = int_to_ptr.vmem [resolvable:$true] %s28
      %34 = dma.hbm_to_vmem [thread:$0]  %s1, 256, %s29, [#allocation6], 128, 128, 8
    $region9: #{tpu_custom_call.1} parent=1 // pred_fallthru
      _
    // Predicated region
    $region10: #{tpu_custom_call.1} parent=1 // pred_check
      _
    $region11: #{tpu_custom_call.1} parent=1 // pred_check_branch
      %36 = sbr.rel (0) target = $region13
    $region12: #{tpu_custom_call.1} parent=1 // pred_region
      %s38 = ssub.s32 20736, 20736
      %39 = vsyncadd [#allocation6], %s38
      %s40 = sshll.u32 [#allocation7], 4
      %s41 = int_to_ptr.vmem [resolvable:$true] %s40
      %46 = dma.hbm_to_vmem [thread:$0]  %s2, 20736, %s41, [#allocation6], 128, 128, 8
    $region13: #{tpu_custom_call.1} parent=1 // pred_fallthru
      _
    // Predicated region
    $region14: #{tpu_custom_call.1} parent=1 // pred_check
      _
    $region15: #{tpu_custom_call.1} parent=1 // pred_check_branch
      %48 = sbr.rel (0) target = $region17
    $region16: #{tpu_custom_call.1} parent=1 // pred_region
      %49 = dma.done [#allocation3], 2048
    $region17: #{tpu_custom_call.1} parent=1 // pred_fallthru
      _
    // Predicated region
    $region18: #{tpu_custom_call.1} parent=1 // pred_check
      _
    $region19: #{tpu_custom_call.1} parent=1 // pred_check_branch
      %51 = sbr.rel (0) target = $region21
    $region20: #{tpu_custom_call.1} parent=1 // pred_region
      %52 = dma.done [#allocation6], 256
    $region21: #{tpu_custom_call.1} parent=1 // pred_fallthru
      _
    // Predicated region
    $region22: #{tpu_custom_call.1} parent=1 // pred_check
      _
    $region23: #{tpu_custom_call.1} parent=1 // pred_check_branch
      %54 = sbr.rel (0) target = $region25
    $region24: #{tpu_custom_call.1} parent=1 // pred_region
      %55 = dma.done [#allocation6], 20736
    $region25: #{tpu_custom_call.1} parent=1 // pred_fallthru
      _
    %v56 = vlaneseq
    %v57 = vand.u32 %v56, 127
    %v58 = vlaneseq
    %v59 = vshrl.u32 %v58, 7
    %v60 = vld [vmem:[#allocation5] sm:$0xff]
    %v61 = vld [vmem:[#allocation5 + $0x8] sm:$0xff]
    %v62 = vld [vmem:[#allocation7] sm:$0xff]
    %v63 = vld [vmem:[#allocation7 + $0x8] sm:$0xff]
    %v64 = vld [vmem:[#allocation7 + $0x10] sm:$0xff]
    %v65 = vld [vmem:[#allocation7 + $0x18] sm:$0xff]
    %v66 = vld [vmem:[#allocation7 + $0x20] sm:$0xff]
    %v67 = vld [vmem:[#allocation7 + $0x28] sm:$0xff]
    %v68 = vld [vmem:[#allocation7 + $0x30] sm:$0xff]
    %v69 = vld [vmem:[#allocation7 + $0x38] sm:$0xff]
    %v70 = vld [vmem:[#allocation7 + $0x40] sm:$0xff]
    %v71 = vld [vmem:[#allocation7 + $0x48] sm:$0xff]
    %v72 = vld [vmem:[#allocation7 + $0x50] sm:$0xff]
    %v73 = vld [vmem:[#allocation7 + $0x58] sm:$0xff]
    %v74 = vld [vmem:[#allocation7 + $0x60] sm:$0xff]
    %v75 = vld [vmem:[#allocation7 + $0x68] sm:$0xff]
    %v76 = vld [vmem:[#allocation7 + $0x70] sm:$0xff]
    %v77 = vld [vmem:[#allocation7 + $0x78] sm:$0xff]
    %v78 = vld [vmem:[#allocation7 + $0x80] sm:$0xff]
    %v79 = vld [vmem:[#allocation7 + $0x88] sm:$0xff]
    %v80 = vld [vmem:[#allocation7 + $0x90] sm:$0xff]
    %v81 = vld [vmem:[#allocation7 + $0x98] sm:$0xff]
    %v82 = vld [vmem:[#allocation7 + $0xa0] sm:$0xff]
    %v83 = vld [vmem:[#allocation7 + $0xa8] sm:$0xff]
    %v84 = vld [vmem:[#allocation7 + $0xb0] sm:$0xff]
    %v85 = vld [vmem:[#allocation7 + $0xb8] sm:$0xff]
    %v86 = vld [vmem:[#allocation7 + $0xc0] sm:$0xff]
    %v87 = vld [vmem:[#allocation7 + $0xc8] sm:$0xff]
    %v88 = vld [vmem:[#allocation7 + $0xd0] sm:$0xff]
    %v89 = vld [vmem:[#allocation7 + $0xd8] sm:$0xff]
    %v90 = vld [vmem:[#allocation7 + $0xe0] sm:$0xff]
    %v91 = vld [vmem:[#allocation7 + $0xe8] sm:$0xff]
    %v92 = vld [vmem:[#allocation7 + $0xf0] sm:$0xff]
    %v93 = vld [vmem:[#allocation7 + $0xf8] sm:$0xff]
    %v94 = vld [vmem:[#allocation7 + $0x500] sm:$0x1]
    %v95 = vld [vmem:[#allocation7 + $0x501] sm:$0x1]
    %v96 = vlaneseq
    %v97 = vshrl.u32 %v96, 7
    %v98 = vsub.s32 0, %v97
    %v99 = vrot.slane %v94, %v98
    %v100 = vlaneseq
    %v101 = vshrl.u32 %v100, 7
    %v102 = vsub.s32 0, %v101
    %v103 = vrot.slane %v95, %v102
    %104 = vmatprep.subr.mxu0 %v78
    %105 = vmatpush1.msra.mxu0 %v62
    %106 = vmatprep.subr.mxu0 %v79
    %107 = vmatpush1.msra.mxu0 %v63
    %108 = vmatprep.subr.mxu0 %v80
    %109 = vmatpush1.msra.mxu0 %v64
    %110 = vmatprep.subr.mxu0 %v81
    %111 = vmatpush1.msra.mxu0 %v65
    %112 = vmatprep.subr.mxu0 %v82
    %113 = vmatpush1.msra.mxu0 %v66
    %114 = vmatprep.subr.mxu0 %v83
    %115 = vmatpush1.msra.mxu0 %v67
    %116 = vmatprep.subr.mxu0 %v84
    %117 = vmatpush1.msra.mxu0 %v68
    %118 = vmatprep.subr.mxu0 %v85
    %119 = vmatpush1.msra.mxu0 %v69
    %120 = vmatprep.subr.mxu0 %v86
    %121 = vmatpush1.msra.mxu0 %v70
    %122 = vmatprep.subr.mxu0 %v87
    %123 = vmatpush1.msra.mxu0 %v71
    %124 = vmatprep.subr.mxu0 %v88
    %125 = vmatpush1.msra.mxu0 %v72
    %126 = vmatprep.subr.mxu0 %v89
    %127 = vmatpush1.msra.mxu0 %v73
    %128 = vmatprep.subr.mxu0 %v90
    %129 = vmatpush1.msra.mxu0 %v74
    %130 = vmatprep.subr.mxu0 %v91
    %131 = vmatpush1.msra.mxu0 %v75
    %132 = vmatprep.subr.mxu0 %v92
    %133 = vmatpush1.msra.mxu0 %v76
    %134 = vmatprep.subr.mxu0 %v93
    %135 = vmatpush1.msra.mxu0 %v77
    %136 = vmatprep.subr.mxu0 0.0
    %137 = vmatpush1.msra.mxu0 0.0
    %138 = vmatprep.subr.mxu0 0.0
    %139 = vmatpush1.msra.mxu0 0.0
    %140 = vmatprep.subr.mxu0 0.0
    %141 = vmatpush1.msra.mxu0 0.0
    %142 = vmatprep.subr.mxu0 0.0
    %143 = vmatpush1.msra.mxu0 0.0
    %144 = vmatprep.subr.mxu0 0.0
    %145 = vmatpush1.msra.mxu0 0.0
    %146 = vmatprep.subr.mxu0 0.0
    %147 = vmatpush1.msra.mxu0 0.0
    %148 = vmatprep.subr.mxu0 0.0
    %149 = vmatpush1.msra.mxu0 0.0
    %150 = vmatprep.subr.mxu0 0.0
    %151 = vmatpush1.msra.mxu0 0.0
    %152 = vmatprep.subr.mxu0 0.0
    %153 = vmatpush1.msra.mxu0 0.0
    %154 = vmatprep.subr.mxu0 0.0
    %155 = vmatpush1.msra.mxu0 0.0
    %156 = vmatprep.subr.mxu0 0.0
    %157 = vmatpush1.msra.mxu0 0.0
    %158 = vmatprep.subr.mxu0 0.0
    %159 = vmatpush1.msra.mxu0 0.0
    %160 = vmatprep.subr.mxu0 0.0
    %161 = vmatpush1.msra.mxu0 0.0
    %162 = vmatprep.subr.mxu0 0.0
    %163 = vmatpush1.msra.mxu0 0.0
    %164 = vmatprep.subr.mxu0 0.0
    %165 = vmatpush1.msra.mxu0 0.0
    %166 = vmatprep.subr.mxu0 0.0
    %167 = vmatpush1.msra.mxu0 0.0
    %168 = vmatprep.mubr.f32.mxu0 0.0
    %169 = vmatmul.mubr.f32.gmra.mrb[0].mxu0 %v60
    %v170 = vpop.f32.mrb[0].mxu0
    %v171 = vadd.f32 %v99, %v170
    %v172 = vpop.f32.mrb[0].mxu0
    %v173 = vadd.f32 %v103, %v172
    %174 = vmatprep.mubr.f32.mxu0 0.0
    %175 = vmatmul.mubr.f32.gmra.mrb[0].mxu0 %v61
    %v176 = vpop.f32.mrb[0].mxu0
    %v177 = vadd.f32 %v99, %v176
    %v178 = vpop.f32.mrb[0].mxu0
    %v179 = vadd.f32 %v103, %v178
    %180 = vdwg.mxu0
    %v181 = vld [vmem:[#allocation7 + $0x100] sm:$0xff]
    %v182 = vld [vmem:[#allocation7 + $0x108] sm:$0xff]
    %v183 = vld [vmem:[#allocation7 + $0x110] sm:$0xff]
    %v184 = vld [vmem:[#allocation7 + $0x118] sm:$0xff]
    %v185 = vld [vmem:[#allocation7 + $0x120] sm:$0xff]
    %v186 = vld [vmem:[#allocation7 + $0x128] sm:$0xff]
    %v187 = vld [vmem:[#allocation7 + $0x130] sm:$0xff]
    %v188 = vld [vmem:[#allocation7 + $0x138] sm:$0xff]
    %v189 = vld [vmem:[#allocation7 + $0x140] sm:$0xff]
    %v190 = vld [vmem:[#allocation7 + $0x148] sm:$0xff]
    %v191 = vld [vmem:[#allocation7 + $0x150] sm:$0xff]
    %v192 = vld [vmem:[#allocation7 + $0x158] sm:$0xff]
    %v193 = vld [vmem:[#allocation7 + $0x160] sm:$0xff]
    %v194 = vld [vmem:[#allocation7 + $0x168] sm:$0xff]
    %v195 = vld [vmem:[#allocation7 + $0x170] sm:$0xff]
    %v196 = vld [vmem:[#allocation7 + $0x178] sm:$0xff]
    %v197 = vld [vmem:[#allocation7 + $0x180] sm:$0xff]
    %v198 = vld [vmem:[#allocation7 + $0x188] sm:$0xff]
    %v199 = vld [vmem:[#allocation7 + $0x190] sm:$0xff]
    %v200 = vld [vmem:[#allocation7 + $0x198] sm:$0xff]
    %v201 = vld [vmem:[#allocation7 + $0x1a0] sm:$0xff]
    %v202 = vld [vmem:[#allocation7 + $0x1a8] sm:$0xff]
    %v203 = vld [vmem:[#allocation7 + $0x1b0] sm:$0xff]
    %v204 = vld [vmem:[#allocation7 + $0x1b8] sm:$0xff]
    %v205 = vld [vmem:[#allocation7 + $0x1c0] sm:$0xff]
    %v206 = vld [vmem:[#allocation7 + $0x1c8] sm:$0xff]
    %v207 = vld [vmem:[#allocation7 + $0x1d0] sm:$0xff]
    %v208 = vld [vmem:[#allocation7 + $0x1d8] sm:$0xff]
    %v209 = vld [vmem:[#allocation7 + $0x1e0] sm:$0xff]
    %v210 = vld [vmem:[#allocation7 + $0x1e8] sm:$0xff]
    %v211 = vld [vmem:[#allocation7 + $0x1f0] sm:$0xff]
    %v212 = vld [vmem:[#allocation7 + $0x1f8] sm:$0xff]
    %v213 = vld [vmem:[#allocation7 + $0x502] sm:$0x1]
    %v214 = vlaneseq
    %v215 = vshrl.u32 %v214, 7
    %v216 = vsub.s32 0, %v215
    %v217 = vrot.slane %v213, %v216
    %218 = vmatprep.subr.mxu0 0.0
    %219 = vmatpush1.msra.mxu0 %v181
    %220 = vmatprep.subr.mxu0 0.0
    %221 = vmatpush1.msra.mxu0 %v182
    %222 = vmatprep.subr.mxu0 0.0
    %223 = vmatpush1.msra.mxu0 %v183
    %224 = vmatprep.subr.mxu0 0.0
    %225 = vmatpush1.msra.mxu0 %v184
    %226 = vmatprep.subr.mxu0 0.0
    %227 = vmatpush1.msra.mxu0 %v185
    %228 = vmatprep.subr.mxu0 0.0
    %229 = vmatpush1.msra.mxu0 %v186
    %230 = vmatprep.subr.mxu0 0.0
    %231 = vmatpush1.msra.mxu0 %v187
    %232 = vmatprep.subr.mxu0 0.0
    %233 = vmatpush1.msra.mxu0 %v188
    %234 = vmatprep.subr.mxu0 0.0
    %235 = vmatpush1.msra.mxu0 %v189
    %236 = vmatprep.subr.mxu0 0.0
    %237 = vmatpush1.msra.mxu0 %v190
    %238 = vmatprep.subr.mxu0 0.0
    %239 = vmatpush1.msra.mxu0 %v191
    %240 = vmatprep.subr.mxu0 0.0
    %241 = vmatpush1.msra.mxu0 %v192
    %242 = vmatprep.subr.mxu0 0.0
    %243 = vmatpush1.msra.mxu0 %v193
    %244 = vmatprep.subr.mxu0 0.0
    %245 = vmatpush1.msra.mxu0 %v194
    %246 = vmatprep.subr.mxu0 0.0
    %247 = vmatpush1.msra.mxu0 %v195
    %248 = vmatprep.subr.mxu0 0.0
    %249 = vmatpush1.msra.mxu0 %v196
    %250 = vmatprep.subr.mxu0 0.0
    %251 = vmatpush1.msra.mxu0 %v197
    %252 = vmatprep.subr.mxu0 0.0
    %253 = vmatpush1.msra.mxu0 %v198
    %254 = vmatprep.subr.mxu0 0.0
    %255 = vmatpush1.msra.mxu0 %v199
    %256 = vmatprep.subr.mxu0 0.0
    %257 = vmatpush1.msra.mxu0 %v200
    %258 = vmatprep.subr.mxu0 0.0
    %259 = vmatpush1.msra.mxu0 %v201
    %260 = vmatprep.subr.mxu0 0.0
    %261 = vmatpush1.msra.mxu0 %v202
    %262 = vmatprep.subr.mxu0 0.0
    %263 = vmatpush1.msra.mxu0 %v203
    %264 = vmatprep.subr.mxu0 0.0
    %265 = vmatpush1.msra.mxu0 %v204
    %266 = vmatprep.subr.mxu0 0.0
    %267 = vmatpush1.msra.mxu0 %v205
    %268 = vmatprep.subr.mxu0 0.0
    %269 = vmatpush1.msra.mxu0 %v206
    %270 = vmatprep.subr.mxu0 0.0
    %271 = vmatpush1.msra.mxu0 %v207
    %272 = vmatprep.subr.mxu0 0.0
    %273 = vmatpush1.msra.mxu0 %v208
    %274 = vmatprep.subr.mxu0 0.0
    %275 = vmatpush1.msra.mxu0 %v209
    %276 = vmatprep.subr.mxu0 0.0
    %277 = vmatpush1.msra.mxu0 %v210
    %278 = vmatprep.subr.mxu0 0.0
    %279 = vmatpush1.msra.mxu0 %v211
    %280 = vmatprep.subr.mxu0 0.0
    %281 = vmatpush1.msra.mxu0 %v212
    %282 = vmatprep.mubr.f32.mxu0 %v173
    %283 = vmatmul.mubr.f32.gmra.mrb[0].mxu0 %v171
    %v284 = vpop.f32.mrb[0].mxu0
    %v285 = vadd.f32 %v217, %v284
    %v286 = vpop.f32.mrb[0].mxu0
    %287 = vmatprep.mubr.f32.mxu0 %v179
    %288 = vmatmul.mubr.f32.gmra.mrb[0].mxu0 %v177
    %v289 = vpop.f32.mrb[0].mxu0
    %v290 = vadd.f32 %v217, %v289
    %v291 = vpop.f32.mrb[0].mxu0
    %292 = vdwg.mxu0
    %v293 = vld [vmem:[#allocation2] sm:$0xff]
    %v294 = vld [vmem:[#allocation2 + $0x8] sm:$0xff]
    %v295 = vld [vmem:[#allocation2 + $0x10] sm:$0xff]
    %v296 = vld [vmem:[#allocation2 + $0x18] sm:$0xff]
    %v297 = vld [vmem:[#allocation2 + $0x20] sm:$0xff]
    %v298 = vld [vmem:[#allocation2 + $0x28] sm:$0xff]
    %v299 = vld [vmem:[#allocation2 + $0x30] sm:$0xff]
    %v300 = vld [vmem:[#allocation2 + $0x38] sm:$0xff]
    %v301 = vld [vmem:[#allocation2 + $0x40] sm:$0xff]
    %v302 = vld [vmem:[#allocation2 + $0x48] sm:$0xff]
    %v303 = vld [vmem:[#allocation2 + $0x50] sm:$0xff]
    %v304 = vld [vmem:[#allocation2 + $0x58] sm:$0xff]
    %v305 = vld [vmem:[#allocation2 + $0x60] sm:$0xff]
    %v306 = vld [vmem:[#allocation2 + $0x68] sm:$0xff]
    %v307 = vld [vmem:[#allocation2 + $0x70] sm:$0xff]
    %v308 = vld [vmem:[#allocation2 + $0x78] sm:$0xff]
    %v309 = vadd.f32 %v293, %v294
    %v310 = vrot.slane %v309, 4
    %v311 = vadd.f32 %v309, %v310
    %v312 = vrot.slane %v311, 2
    %v313 = vadd.f32 %v311, %v312
    %v314 = vrot.slane %v313, 1
    %v315 = vadd.f32 %v313, %v314
    %v316 = vadd.f32 %v295, %v296
    %v317 = vrot.slane %v316, 4
    %v318 = vadd.f32 %v316, %v317
    %v319 = vrot.slane %v318, 2
    %v320 = vadd.f32 %v318, %v319
    %v321 = vrot.slane %v320, 1
    %v322 = vadd.f32 %v320, %v321
    %v323 = vadd.f32 %v297, %v298
    %v324 = vrot.slane %v323, 4
    %v325 = vadd.f32 %v323, %v324
    %v326 = vrot.slane %v325, 2
    %v327 = vadd.f32 %v325, %v326
    %v328 = vrot.slane %v327, 1
    %v329 = vadd.f32 %v327, %v328
    %v330 = vadd.f32 %v299, %v300
    %v331 = vrot.slane %v330, 4
    %v332 = vadd.f32 %v330, %v331
    %v333 = vrot.slane %v332, 2
    %v334 = vadd.f32 %v332, %v333
    %v335 = vrot.slane %v334, 1
    %v336 = vadd.f32 %v334, %v335
    %v337 = vadd.f32 %v301, %v302
    %v338 = vrot.slane %v337, 4
    %v339 = vadd.f32 %v337, %v338
    %v340 = vrot.slane %v339, 2
    %v341 = vadd.f32 %v339, %v340
    %v342 = vrot.slane %v341, 1
    %v343 = vadd.f32 %v341, %v342
    %v344 = vadd.f32 %v303, %v304
    %v345 = vrot.slane %v344, 4
    %v346 = vadd.f32 %v344, %v345
    %v347 = vrot.slane %v346, 2
    %v348 = vadd.f32 %v346, %v347
    %v349 = vrot.slane %v348, 1
    %v350 = vadd.f32 %v348, %v349
    %v351 = vadd.f32 %v305, %v306
    %v352 = vrot.slane %v351, 4
    %v353 = vadd.f32 %v351, %v352
    %v354 = vrot.slane %v353, 2
    %v355 = vadd.f32 %v353, %v354
    %v356 = vrot.slane %v355, 1
    %v357 = vadd.f32 %v355, %v356
    %v358 = vadd.f32 %v307, %v308
    %v359 = vrot.slane %v358, 4
    %v360 = vadd.f32 %v358, %v359
    %v361 = vrot.slane %v360, 2
    %v362 = vadd.f32 %v360, %v361
    %v363 = vrot.slane %v362, 1
    %v364 = vadd.f32 %v362, %v363
    %v365 = vmul.f32 %v315, 0.0625
    %v366 = vmul.f32 %v322, 0.0625
    %v367 = vmul.f32 %v329, 0.0625
    %v368 = vmul.f32 %v336, 0.0625
    %v369 = vmul.f32 %v343, 0.0625
    %v370 = vmul.f32 %v350, 0.0625
    %v371 = vmul.f32 %v357, 0.0625
    %v372 = vmul.f32 %v364, 0.0625
    %v373 = vmax.f32 %v293, %v294
    %v374 = vrot.slane %v373, 4
    %v375 = vmax.f32 %v373, %v374
    %v376 = vrot.slane %v375, 2
    %v377 = vmax.f32 %v375, %v376
    %v378 = vrot.slane %v377, 1
    %v379 = vmax.f32 %v377, %v378
    %v380 = vmax.f32 %v295, %v296
    %v381 = vrot.slane %v380, 4
    %v382 = vmax.f32 %v380, %v381
    %v383 = vrot.slane %v382, 2
    %v384 = vmax.f32 %v382, %v383
    %v385 = vrot.slane %v384, 1
    %v386 = vmax.f32 %v384, %v385
    %v387 = vmax.f32 %v297, %v298
    %v388 = vrot.slane %v387, 4
    %v389 = vmax.f32 %v387, %v388
    %v390 = vrot.slane %v389, 2
    %v391 = vmax.f32 %v389, %v390
    %v392 = vrot.slane %v391, 1
    %v393 = vmax.f32 %v391, %v392
    %v394 = vmax.f32 %v299, %v300
    %v395 = vrot.slane %v394, 4
    %v396 = vmax.f32 %v394, %v395
    %v397 = vrot.slane %v396, 2
    %v398 = vmax.f32 %v396, %v397
    %v399 = vrot.slane %v398, 1
    %v400 = vmax.f32 %v398, %v399
    %v401 = vmax.f32 %v301, %v302
    %v402 = vrot.slane %v401, 4
    %v403 = vmax.f32 %v401, %v402
    %v404 = vrot.slane %v403, 2
    %v405 = vmax.f32 %v403, %v404
    %v406 = vrot.slane %v405, 1
    %v407 = vmax.f32 %v405, %v406
    %v408 = vmax.f32 %v303, %v304
    %v409 = vrot.slane %v408, 4
    %v410 = vmax.f32 %v408, %v409
    %v411 = vrot.slane %v410, 2
    %v412 = vmax.f32 %v410, %v411
    %v413 = vrot.slane %v412, 1
    %v414 = vmax.f32 %v412, %v413
    %v415 = vmax.f32 %v305, %v306
    %v416 = vrot.slane %v415, 4
    %v417 = vmax.f32 %v415, %v416
    %v418 = vrot.slane %v417, 2
    %v419 = vmax.f32 %v417, %v418
    %v420 = vrot.slane %v419, 1
    %v421 = vmax.f32 %v419, %v420
    %v422 = vmax.f32 %v307, %v308
    %v423 = vrot.slane %v422, 4
    %v424 = vmax.f32 %v422, %v423
    %v425 = vrot.slane %v424, 2
    %v426 = vmax.f32 %v424, %v425
    %v427 = vrot.slane %v426, 1
    %v428 = vmax.f32 %v426, %v427
    %vm429 = vcmp.lt.s32.totalorder %v57, 64
    %vm438 = vcmask 1041409
    %v439 = vsel %vm438, %v366, %v365
    %vm440 = vcmask 1042434
    %v441 = vsel %vm440, %v367, %v439
    %vm442 = vcmask 1043459
    %v443 = vsel %vm442, %v368, %v441
    %vm444 = vcmask 1044484
    %v445 = vsel %vm444, %v369, %v443
    %vm446 = vcmask 1045509
    %v447 = vsel %vm446, %v370, %v445
    %vm448 = vcmask 1046534
    %v449 = vsel %vm448, %v371, %v447
    %vm450 = vcmask 1047559
    %v451 = vsel %vm450, %v372, %v449
    %v461 = vsel %vm438, %v386, %v379
    %v462 = vsel %vm440, %v393, %v461
    %v463 = vsel %vm442, %v400, %v462
    %v464 = vsel %vm444, %v407, %v463
    %v465 = vsel %vm446, %v414, %v464
    %v466 = vsel %vm448, %v421, %v465
    %v467 = vsel %vm450, %v428, %v466
    %v469 = vsel %vm429, %v451, %v467
    %v470 = vld [vmem:[#allocation7 + $0x200] sm:$0xff]
    %v471 = vld [vmem:[#allocation7 + $0x208] sm:$0xff]
    %v472 = vld [vmem:[#allocation7 + $0x210] sm:$0xff]
    %v473 = vld [vmem:[#allocation7 + $0x218] sm:$0xff]
    %v474 = vld [vmem:[#allocation7 + $0x220] sm:$0xff]
    %v475 = vld [vmem:[#allocation7 + $0x228] sm:$0xff]
    %v476 = vld [vmem:[#allocation7 + $0x230] sm:$0xff]
    %v477 = vld [vmem:[#allocation7 + $0x238] sm:$0xff]
    %v478 = vld [vmem:[#allocation7 + $0x240] sm:$0xff]
    %v479 = vld [vmem:[#allocation7 + $0x248] sm:$0xff]
    %v480 = vld [vmem:[#allocation7 + $0x250] sm:$0xff]
    %v481 = vld [vmem:[#allocation7 + $0x258] sm:$0xff]
    %v482 = vld [vmem:[#allocation7 + $0x260] sm:$0xff]
    %v483 = vld [vmem:[#allocation7 + $0x268] sm:$0xff]
    %v484 = vld [vmem:[#allocation7 + $0x270] sm:$0xff]
    %v485 = vld [vmem:[#allocation7 + $0x278] sm:$0xff]
    %v486 = vld [vmem:[#allocation7 + $0x503] sm:$0x1]
    %v487 = vlaneseq
    %v488 = vshrl.u32 %v487, 7
    %v489 = vsub.s32 0, %v488
    %v490 = vrot.slane %v486, %v489
    %491 = vmatprep.subr.mxu0 0.0
    %492 = vmatpush1.msra.mxu0 %v470
    %493 = vmatprep.subr.mxu0 0.0
    %494 = vmatpush1.msra.mxu0 %v471
    %495 = vmatprep.subr.mxu0 0.0
    %496 = vmatpush1.msra.mxu0 %v472
    %497 = vmatprep.subr.mxu0 0.0
    %498 = vmatpush1.msra.mxu0 %v473
    %499 = vmatprep.subr.mxu0 0.0
    %500 = vmatpush1.msra.mxu0 %v474
    %501 = vmatprep.subr.mxu0 0.0
    %502 = vmatpush1.msra.mxu0 %v475
    %503 = vmatprep.subr.mxu0 0.0
    %504 = vmatpush1.msra.mxu0 %v476
    %505 = vmatprep.subr.mxu0 0.0
    %506 = vmatpush1.msra.mxu0 %v477
    %507 = vmatprep.subr.mxu0 0.0
    %508 = vmatpush1.msra.mxu0 %v478
    %509 = vmatprep.subr.mxu0 0.0
    %510 = vmatpush1.msra.mxu0 %v479
    %511 = vmatprep.subr.mxu0 0.0
    %512 = vmatpush1.msra.mxu0 %v480
    %513 = vmatprep.subr.mxu0 0.0
    %514 = vmatpush1.msra.mxu0 %v481
    %515 = vmatprep.subr.mxu0 0.0
    %516 = vmatpush1.msra.mxu0 %v482
    %517 = vmatprep.subr.mxu0 0.0
    %518 = vmatpush1.msra.mxu0 %v483
    %519 = vmatprep.subr.mxu0 0.0
    %520 = vmatpush1.msra.mxu0 %v484
    %521 = vmatprep.subr.mxu0 0.0
    %522 = vmatpush1.msra.mxu0 %v485
    %523 = vmatprep.subr.mxu0 0.0
    %524 = vmatpush1.msra.mxu0 0.0
    %525 = vmatprep.subr.mxu0 0.0
    %526 = vmatpush1.msra.mxu0 0.0
    %527 = vmatprep.subr.mxu0 0.0
    %528 = vmatpush1.msra.mxu0 0.0
    %529 = vmatprep.subr.mxu0 0.0
    %530 = vmatpush1.msra.mxu0 0.0
    %531 = vmatprep.subr.mxu0 0.0
    %532 = vmatpush1.msra.mxu0 0.0
    %533 = vmatprep.subr.mxu0 0.0
    %534 = vmatpush1.msra.mxu0 0.0
    %535 = vmatprep.subr.mxu0 0.0
    %536 = vmatpush1.msra.mxu0 0.0
    %537 = vmatprep.subr.mxu0 0.0
    %538 = vmatpush1.msra.mxu0 0.0
    %539 = vmatprep.subr.mxu0 0.0
    %540 = vmatpush1.msra.mxu0 0.0
    %541 = vmatprep.subr.mxu0 0.0
    %542 = vmatpush1.msra.mxu0 0.0
    %543 = vmatprep.subr.mxu0 0.0
    %544 = vmatpush1.msra.mxu0 0.0
    %545 = vmatprep.subr.mxu0 0.0
    %546 = vmatpush1.msra.mxu0 0.0
    %547 = vmatprep.subr.mxu0 0.0
    %548 = vmatpush1.msra.mxu0 0.0
    %549 = vmatprep.subr.mxu0 0.0
    %550 = vmatpush1.msra.mxu0 0.0
    %551 = vmatprep.subr.mxu0 0.0
    %552 = vmatpush1.msra.mxu0 0.0
    %553 = vmatprep.subr.mxu0 0.0
    %554 = vmatpush1.msra.mxu0 0.0
    %555 = vmatprep.mubr.f32.mxu0 0.0
    %556 = vmatmul.mubr.f32.gmra.mrb[0].mxu0 %v469
    %v557 = vpop.f32.mrb[0].mxu0
    %v558 = vadd.f32 %v490, %v557
    %v559 = vpop.f32.mrb[0].mxu0
    %560 = vdwg.mxu0
    %vm561 = vcmp.lt.s32.totalorder %v57, 32
    %562 = vadd.xlane.f32.xlu0 %v558
    %v563 = vpop.xlane.xlu0 %562
    %v564 = vmul.f32 %v563, 0.03125
    %v565 = vsub.f32 %v558, %v564
    %v566 = vsel %vm561, %v565, 0.0
    %v567 = vmul.f32 %v566, %v566
    %568 = vadd.xlane.f32.xlu0 %v567
    %v569 = vpop.xlane.xlu0 %568
    %v570 = vmul.f32 %v569, 0.03125
    %v571 = vadd.f32 %v570, 1e-05
    %v572 = vrsqrt.pop %v571
    %v573 = vmul.f32 %v566, %v572
    %v574 = vld [vmem:[#allocation7 + $0x504] sm:$0x1]
    %v575 = vlaneseq
    %v576 = vshrl.u32 %v575, 7
    %v577 = vsub.s32 0, %v576
    %v578 = vrot.slane %v574, %v577
    %v579 = vmul.f32 %v573, %v578
    %v580 = vld [vmem:[#allocation7 + $0x505] sm:$0x1]
    %v581 = vlaneseq
    %v582 = vshrl.u32 %v581, 7
    %v583 = vsub.s32 0, %v582
    %v584 = vrot.slane %v580, %v583
    %v585 = vadd.f32 %v579, %v584
    %v586 = vld [vmem:[#allocation7 + $0x280] sm:$0xff]
    %v587 = vld [vmem:[#allocation7 + $0x288] sm:$0xff]
    %v588 = vld [vmem:[#allocation7 + $0x290] sm:$0xff]
    %v589 = vld [vmem:[#allocation7 + $0x298] sm:$0xff]
    %v590 = vld [vmem:[#allocation7 + $0x2a0] sm:$0xff]
    %v591 = vld [vmem:[#allocation7 + $0x2a8] sm:$0xff]
    %v592 = vld [vmem:[#allocation7 + $0x2b0] sm:$0xff]
    %v593 = vld [vmem:[#allocation7 + $0x2b8] sm:$0xff]
    %v594 = vld [vmem:[#allocation7 + $0x2c0] sm:$0xff]
    %v595 = vld [vmem:[#allocation7 + $0x2c8] sm:$0xff]
    %v596 = vld [vmem:[#allocation7 + $0x2d0] sm:$0xff]
    %v597 = vld [vmem:[#allocation7 + $0x2d8] sm:$0xff]
    %v598 = vld [vmem:[#allocation7 + $0x2e0] sm:$0xff]
    %v599 = vld [vmem:[#allocation7 + $0x2e8] sm:$0xff]
    %v600 = vld [vmem:[#allocation7 + $0x2f0] sm:$0xff]
    %v601 = vld [vmem:[#allocation7 + $0x2f8] sm:$0xff]
    %v602 = vld [vmem:[#allocation7 + $0x300] sm:$0xff]
    %v603 = vld [vmem:[#allocation7 + $0x308] sm:$0xff]
    %v604 = vld [vmem:[#allocation7 + $0x310] sm:$0xff]
    %v605 = vld [vmem:[#allocation7 + $0x318] sm:$0xff]
    %v606 = vld [vmem:[#allocation7 + $0x320] sm:$0xff]
    %v607 = vld [vmem:[#allocation7 + $0x328] sm:$0xff]
    %v608 = vld [vmem:[#allocation7 + $0x330] sm:$0xff]
    %v609 = vld [vmem:[#allocation7 + $0x338] sm:$0xff]
    %v610 = vld [vmem:[#allocation7 + $0x340] sm:$0xff]
    %v611 = vld [vmem:[#allocation7 + $0x348] sm:$0xff]
    %v612 = vld [vmem:[#allocation7 + $0x350] sm:$0xff]
    %v613 = vld [vmem:[#allocation7 + $0x358] sm:$0xff]
    %v614 = vld [vmem:[#allocation7 + $0x360] sm:$0xff]
    %v615 = vld [vmem:[#allocation7 + $0x368] sm:$0xff]
    %v616 = vld [vmem:[#allocation7 + $0x370] sm:$0xff]
    %v617 = vld [vmem:[#allocation7 + $0x378] sm:$0xff]
    %v618 = vld [vmem:[#allocation7 + $0x380] sm:$0xff]
    %v619 = vld [vmem:[#allocation7 + $0x388] sm:$0xff]
    %v620 = vld [vmem:[#allocation7 + $0x390] sm:$0xff]
    %v621 = vld [vmem:[#allocation7 + $0x398] sm:$0xff]
    %v622 = vld [vmem:[#allocation7 + $0x3a0] sm:$0xff]
    %v623 = vld [vmem:[#allocation7 + $0x3a8] sm:$0xff]
    %v624 = vld [vmem:[#allocation7 + $0x3b0] sm:$0xff]
    %v625 = vld [vmem:[#allocation7 + $0x3b8] sm:$0xff]
    %v626 = vld [vmem:[#allocation7 + $0x3c0] sm:$0xff]
    %v627 = vld [vmem:[#allocation7 + $0x3c8] sm:$0xff]
    %v628 = vld [vmem:[#allocation7 + $0x3d0] sm:$0xff]
    %v629 = vld [vmem:[#allocation7 + $0x3d8] sm:$0xff]
    %v630 = vld [vmem:[#allocation7 + $0x3e0] sm:$0xff]
    %v631 = vld [vmem:[#allocation7 + $0x3e8] sm:$0xff]
    %v632 = vld [vmem:[#allocation7 + $0x3f0] sm:$0xff]
    %v633 = vld [vmem:[#allocation7 + $0x3f8] sm:$0xff]
    %v634 = vld [vmem:[#allocation7 + $0x506] sm:$0x1]
    %v635 = vlaneseq
    %v636 = vshrl.u32 %v635, 7
    %v637 = vsub.s32 0, %v636
    %v638 = vrot.slane %v634, %v637
    %639 = vmatprep.subr.mxu0 0.0
    %640 = vmatpush1.msra.mxu0 %v586
    %641 = vmatprep.subr.mxu0 0.0
    %642 = vmatpush1.msra.mxu0 %v587
    %643 = vmatprep.subr.mxu0 0.0
    %644 = vmatpush1.msra.mxu0 %v588
    %645 = vmatprep.subr.mxu0 0.0
    %646 = vmatpush1.msra.mxu0 %v589
    %647 = vmatprep.subr.mxu0 0.0
    %648 = vmatpush1.msra.mxu0 %v590
    %649 = vmatprep.subr.mxu0 0.0
    %650 = vmatpush1.msra.mxu0 %v591
    %651 = vmatprep.subr.mxu0 0.0
    %652 = vmatpush1.msra.mxu0 %v592
    %653 = vmatprep.subr.mxu0 0.0
    %654 = vmatpush1.msra.mxu0 %v593
    %655 = vmatprep.subr.mxu0 0.0
    %656 = vmatpush1.msra.mxu0 %v594
    %657 = vmatprep.subr.mxu0 0.0
    %658 = vmatpush1.msra.mxu0 %v595
    %659 = vmatprep.subr.mxu0 0.0
    %660 = vmatpush1.msra.mxu0 %v596
    %661 = vmatprep.subr.mxu0 0.0
    %662 = vmatpush1.msra.mxu0 %v597
    %663 = vmatprep.subr.mxu0 0.0
    %664 = vmatpush1.msra.mxu0 %v598
    %665 = vmatprep.subr.mxu0 0.0
    %666 = vmatpush1.msra.mxu0 %v599
    %667 = vmatprep.subr.mxu0 0.0
    %668 = vmatpush1.msra.mxu0 %v600
    %669 = vmatprep.subr.mxu0 0.0
    %670 = vmatpush1.msra.mxu0 %v601
    %671 = vmatprep.subr.mxu0 0.0
    %672 = vmatpush1.msra.mxu0 %v602
    %673 = vmatprep.subr.mxu0 0.0
    %674 = vmatpush1.msra.mxu0 %v603
    %675 = vmatprep.subr.mxu0 0.0
    %676 = vmatpush1.msra.mxu0 %v604
    %677 = vmatprep.subr.mxu0 0.0
    %678 = vmatpush1.msra.mxu0 %v605
    %679 = vmatprep.subr.mxu0 0.0
    %680 = vmatpush1.msra.mxu0 %v606
    %681 = vmatprep.subr.mxu0 0.0
    %682 = vmatpush1.msra.mxu0 %v607
    %683 = vmatprep.subr.mxu0 0.0
    %684 = vmatpush1.msra.mxu0 %v608
    %685 = vmatprep.subr.mxu0 0.0
    %686 = vmatpush1.msra.mxu0 %v609
    %687 = vmatprep.subr.mxu0 0.0
    %688 = vmatpush1.msra.mxu0 %v610
    %689 = vmatprep.subr.mxu0 0.0
    %690 = vmatpush1.msra.mxu0 %v611
    %691 = vmatprep.subr.mxu0 0.0
    %692 = vmatpush1.msra.mxu0 %v612
    %693 = vmatprep.subr.mxu0 0.0
    %694 = vmatpush1.msra.mxu0 %v613
    %695 = vmatprep.subr.mxu0 0.0
    %696 = vmatpush1.msra.mxu0 %v614
    %697 = vmatprep.subr.mxu0 0.0
    %698 = vmatpush1.msra.mxu0 %v615
    %699 = vmatprep.subr.mxu0 0.0
    %700 = vmatpush1.msra.mxu0 %v616
    %701 = vmatprep.subr.mxu0 0.0
    %702 = vmatpush1.msra.mxu0 %v617
    %703 = vmatprep.mubr.f32.mxu0 %v290
    %704 = vmatmul.mubr.f32.gmra.mrb[0].mxu0 %v285
    %v705 = vpop.f32.mrb[0].mxu0
    %v706 = vadd.f32 %v638, %v705
    %v707 = vpop.f32.mrb[0].mxu0
    %708 = vmatprep.mubr.f32.mxu0 %v177
    %709 = vmatmul.mubr.f32.gmra.mrb[0].mxu0 %v173
    %v710 = vpop.f32.mrb[0].mxu0
    %v711 = vadd.f32 %v638, %v710
    %v712 = vpop.f32.mrb[0].mxu0
    %713 = vmatprep.mubr.f32.mxu0 %v179
    %714 = vmatmul.mubr.f32.gmra.mrb[0].mxu0 %v171
    %v715 = vpop.f32.mrb[0].mxu0
    %v716 = vadd.f32 %v638, %v715
    %v717 = vpop.f32.mrb[0].mxu0
    %718 = vdwg.mxu0
    %719 = vmatprep.subr.mxu0 0.0
    %720 = vmatpush1.msra.mxu0 %v618
    %721 = vmatprep.subr.mxu0 0.0
    %722 = vmatpush1.msra.mxu0 %v619
    %723 = vmatprep.subr.mxu0 0.0
    %724 = vmatpush1.msra.mxu0 %v620
    %725 = vmatprep.subr.mxu0 0.0
    %726 = vmatpush1.msra.mxu0 %v621
    %727 = vmatprep.subr.mxu0 0.0
    %728 = vmatpush1.msra.mxu0 %v622
    %729 = vmatprep.subr.mxu0 0.0
    %730 = vmatpush1.msra.mxu0 %v623
    %731 = vmatprep.subr.mxu0 0.0
    %732 = vmatpush1.msra.mxu0 %v624
    %733 = vmatprep.subr.mxu0 0.0
    %734 = vmatpush1.msra.mxu0 %v625
    %735 = vmatprep.subr.mxu0 0.0
    %736 = vmatpush1.msra.mxu0 %v626
    %737 = vmatprep.subr.mxu0 0.0
    %738 = vmatpush1.msra.mxu0 %v627
    %739 = vmatprep.subr.mxu0 0.0
    %740 = vmatpush1.msra.mxu0 %v628
    %741 = vmatprep.subr.mxu0 0.0
    %742 = vmatpush1.msra.mxu0 %v629
    %743 = vmatprep.subr.mxu0 0.0
    %744 = vmatpush1.msra.mxu0 %v630
    %745 = vmatprep.subr.mxu0 0.0
    %746 = vmatpush1.msra.mxu0 %v631
    %747 = vmatprep.subr.mxu0 0.0
    %748 = vmatpush1.msra.mxu0 %v632
    %749 = vmatprep.subr.mxu0 0.0
    %750 = vmatpush1.msra.mxu0 %v633
    %751 = vmatprep.subr.mxu0 0.0
    %752 = vmatpush1.msra.mxu0 0.0
    %753 = vmatprep.subr.mxu0 0.0
    %754 = vmatpush1.msra.mxu0 0.0
    %755 = vmatprep.subr.mxu0 0.0
    %756 = vmatpush1.msra.mxu0 0.0
    %757 = vmatprep.subr.mxu0 0.0
    %758 = vmatpush1.msra.mxu0 0.0
    %759 = vmatprep.subr.mxu0 0.0
    %760 = vmatpush1.msra.mxu0 0.0
    %761 = vmatprep.subr.mxu0 0.0
    %762 = vmatpush1.msra.mxu0 0.0
    %763 = vmatprep.subr.mxu0 0.0
    %764 = vmatpush1.msra.mxu0 0.0
    %765 = vmatprep.subr.mxu0 0.0
    %766 = vmatpush1.msra.mxu0 0.0
    %767 = vmatprep.subr.mxu0 0.0
    %768 = vmatpush1.msra.mxu0 0.0
    %769 = vmatprep.subr.mxu0 0.0
    %770 = vmatpush1.msra.mxu0 0.0
    %771 = vmatprep.subr.mxu0 0.0
    %772 = vmatpush1.msra.mxu0 0.0
    %773 = vmatprep.subr.mxu0 0.0
    %774 = vmatpush1.msra.mxu0 0.0
    %775 = vmatprep.subr.mxu0 0.0
    %776 = vmatpush1.msra.mxu0 0.0
    %777 = vmatprep.subr.mxu0 0.0
    %778 = vmatpush1.msra.mxu0 0.0
    %779 = vmatprep.subr.mxu0 0.0
    %780 = vmatpush1.msra.mxu0 0.0
    %781 = vmatprep.subr.mxu0 0.0
    %782 = vmatpush1.msra.mxu0 0.0
    %783 = vmatprep.mubr.f32.mxu0 0.0
    %784 = vmatmul.mubr.f32.gmra.mrb[0].mxu0 %v585
    %v785 = vpop.f32.mrb[0].mxu0
    %v786 = vadd.f32 %v706, %v785
    %v787 = vpop.f32.mrb[0].mxu0
    %788 = vmatprep.mubr.f32.mxu0 0.0
    %789 = vmatmul.mubr.f32.gmra.mrb[0].mxu0 %v585
    %v790 = vpop.f32.mrb[0].mxu0
    %v791 = vadd.f32 %v711, %v790
    %v792 = vpop.f32.mrb[0].mxu0
    %793 = vmatprep.mubr.f32.mxu0 0.0
    %794 = vmatmul.mubr.f32.gmra.mrb[0].mxu0 %v585
    %v795 = vpop.f32.mrb[0].mxu0
    %v796 = vadd.f32 %v716, %v795
    %v797 = vpop.f32.mrb[0].mxu0
    %798 = vdwg.mxu0
    %v799 = vmax.f32 %v786, 0.0
    %v800 = vmax.f32 %v791, 0.0
    %v801 = vmax.f32 %v796, 0.0
    %v802 = vld [vmem:[#allocation7 + $0x400] sm:$0xff]
    %v803 = vld [vmem:[#allocation7 + $0x408] sm:$0xff]
    %v804 = vld [vmem:[#allocation7 + $0x410] sm:$0xff]
    %v805 = vld [vmem:[#allocation7 + $0x418] sm:$0xff]
    %v806 = vld [vmem:[#allocation7 + $0x420] sm:$0xff]
    %v807 = vld [vmem:[#allocation7 + $0x428] sm:$0xff]
    %v808 = vld [vmem:[#allocation7 + $0x430] sm:$0xff]
    %v809 = vld [vmem:[#allocation7 + $0x438] sm:$0xff]
    %v810 = vld [vmem:[#allocation7 + $0x440] sm:$0xff]
    %v811 = vld [vmem:[#allocation7 + $0x448] sm:$0xff]
    %v812 = vld [vmem:[#allocation7 + $0x450] sm:$0xff]
    %v813 = vld [vmem:[#allocation7 + $0x458] sm:$0xff]
    %v814 = vld [vmem:[#allocation7 + $0x460] sm:$0xff]
    %v815 = vld [vmem:[#allocation7 + $0x468] sm:$0xff]
    %v816 = vld [vmem:[#allocation7 + $0x470] sm:$0xff]
    %v817 = vld [vmem:[#allocation7 + $0x478] sm:$0xff]
    %v818 = vld [vmem:[#allocation7 + $0x507] sm:$0x1]
    %v819 = vlaneseq
    %v820 = vshrl.u32 %v819, 7
    %v821 = vsub.s32 0, %v820
    %v822 = vrot.slane %v818, %v821
    %823 = vmatprep.subr.mxu0 0.0
    %824 = vmatpush1.msra.mxu0 %v802
    %825 = vmatprep.subr.mxu0 0.0
    %826 = vmatpush1.msra.mxu0 %v803
    %827 = vmatprep.subr.mxu0 0.0
    %828 = vmatpush1.msra.mxu0 %v804
    %829 = vmatprep.subr.mxu0 0.0
    %830 = vmatpush1.msra.mxu0 %v805
    %831 = vmatprep.subr.mxu0 0.0
    %832 = vmatpush1.msra.mxu0 %v806
    %833 = vmatprep.subr.mxu0 0.0
    %834 = vmatpush1.msra.mxu0 %v807
    %835 = vmatprep.subr.mxu0 0.0
    %836 = vmatpush1.msra.mxu0 %v808
    %837 = vmatprep.subr.mxu0 0.0
    %838 = vmatpush1.msra.mxu0 %v809
    %839 = vmatprep.subr.mxu0 0.0
    %840 = vmatpush1.msra.mxu0 %v810
    %841 = vmatprep.subr.mxu0 0.0
    %842 = vmatpush1.msra.mxu0 %v811
    %843 = vmatprep.subr.mxu0 0.0
    %844 = vmatpush1.msra.mxu0 %v812
    %845 = vmatprep.subr.mxu0 0.0
    %846 = vmatpush1.msra.mxu0 %v813
    %847 = vmatprep.subr.mxu0 0.0
    %848 = vmatpush1.msra.mxu0 %v814
    %849 = vmatprep.subr.mxu0 0.0
    %850 = vmatpush1.msra.mxu0 %v815
    %851 = vmatprep.subr.mxu0 0.0
    %852 = vmatpush1.msra.mxu0 %v816
    %853 = vmatprep.subr.mxu0 0.0
    %854 = vmatpush1.msra.mxu0 %v817
    %855 = vmatprep.subr.mxu0 0.0
    %856 = vmatpush1.msra.mxu0 0.0
    %857 = vmatprep.subr.mxu0 0.0
    %858 = vmatpush1.msra.mxu0 0.0
    %859 = vmatprep.subr.mxu0 0.0
    %860 = vmatpush1.msra.mxu0 0.0
    %861 = vmatprep.subr.mxu0 0.0
    %862 = vmatpush1.msra.mxu0 0.0
    %863 = vmatprep.subr.mxu0 0.0
    %864 = vmatpush1.msra.mxu0 0.0
    %865 = vmatprep.subr.mxu0 0.0
    %866 = vmatpush1.msra.mxu0 0.0
    %867 = vmatprep.subr.mxu0 0.0
    %868 = vmatpush1.msra.mxu0 0.0
    %869 = vmatprep.subr.mxu0 0.0
    %870 = vmatpush1.msra.mxu0 0.0
    %871 = vmatprep.subr.mxu0 0.0
    %872 = vmatpush1.msra.mxu0 0.0
    %873 = vmatprep.subr.mxu0 0.0
    %874 = vmatpush1.msra.mxu0 0.0
    %875 = vmatprep.subr.mxu0 0.0
    %876 = vmatpush1.msra.mxu0 0.0
    %877 = vmatprep.subr.mxu0 0.0
    %878 = vmatpush1.msra.mxu0 0.0
    %879 = vmatprep.subr.mxu0 0.0
    %880 = vmatpush1.msra.mxu0 0.0
    %881 = vmatprep.subr.mxu0 0.0
    %882 = vmatpush1.msra.mxu0 0.0
    %883 = vmatprep.subr.mxu0 0.0
    %884 = vmatpush1.msra.mxu0 0.0
    %885 = vmatprep.subr.mxu0 0.0
    %886 = vmatpush1.msra.mxu0 0.0
    %887 = vmatprep.mubr.f32.mxu0 0.0
    %888 = vmatmul.mubr.f32.gmra.mrb[0].mxu0 %v799
    %v889 = vpop.f32.mrb[0].mxu0
    %v890 = vadd.f32 %v822, %v889
    %v891 = vpop.f32.mrb[0].mxu0
    %892 = vmatprep.mubr.f32.mxu0 0.0
    %893 = vmatmul.mubr.f32.gmra.mrb[0].mxu0 %v800
    %v894 = vpop.f32.mrb[0].mxu0
    %v895 = vadd.f32 %v822, %v894
    %v896 = vpop.f32.mrb[0].mxu0
    %897 = vmatprep.mubr.f32.mxu0 0.0
    %898 = vmatmul.mubr.f32.gmra.mrb[0].mxu0 %v801
    %v899 = vpop.f32.mrb[0].mxu0
    %v900 = vadd.f32 %v822, %v899
    %v901 = vpop.f32.mrb[0].mxu0
    %902 = vdwg.mxu0
    %v903 = vmax.f32 %v890, 0.0
    %v904 = vmax.f32 %v895, 0.0
    %v905 = vmax.f32 %v900, 0.0
    %v906 = vld [vmem:[#allocation7 + $0x480] sm:$0xff]
    %v907 = vld [vmem:[#allocation7 + $0x488] sm:$0xff]
    %v908 = vld [vmem:[#allocation7 + $0x490] sm:$0xff]
    %v909 = vld [vmem:[#allocation7 + $0x498] sm:$0xff]
    %v910 = vld [vmem:[#allocation7 + $0x4a0] sm:$0xff]
    %v911 = vld [vmem:[#allocation7 + $0x4a8] sm:$0xff]
    %v912 = vld [vmem:[#allocation7 + $0x4b0] sm:$0xff]
    %v913 = vld [vmem:[#allocation7 + $0x4b8] sm:$0xff]
    %v914 = vld [vmem:[#allocation7 + $0x4c0] sm:$0xff]
    %v915 = vld [vmem:[#allocation7 + $0x4c8] sm:$0xff]
    %v916 = vld [vmem:[#allocation7 + $0x4d0] sm:$0xff]
    %v917 = vld [vmem:[#allocation7 + $0x4d8] sm:$0xff]
    %v918 = vld [vmem:[#allocation7 + $0x4e0] sm:$0xff]
    %v919 = vld [vmem:[#allocation7 + $0x4e8] sm:$0xff]
    %v920 = vld [vmem:[#allocation7 + $0x4f0] sm:$0xff]
    %v921 = vld [vmem:[#allocation7 + $0x4f8] sm:$0xff]
    %v922 = vld [vmem:[#allocation7 + $0x508] sm:$0x1]
    %v923 = vlaneseq
    %v924 = vshrl.u32 %v923, 7
    %v925 = vsub.s32 0, %v924
    %v926 = vrot.slane %v922, %v925
    %927 = vmatprep.subr.mxu0 0.0
    %928 = vmatpush1.msra.mxu0 %v906
    %929 = vmatprep.subr.mxu0 0.0
    %930 = vmatpush1.msra.mxu0 %v907
    %931 = vmatprep.subr.mxu0 0.0
    %932 = vmatpush1.msra.mxu0 %v908
    %933 = vmatprep.subr.mxu0 0.0
    %934 = vmatpush1.msra.mxu0 %v909
    %935 = vmatprep.subr.mxu0 0.0
    %936 = vmatpush1.msra.mxu0 %v910
    %937 = vmatprep.subr.mxu0 0.0
    %938 = vmatpush1.msra.mxu0 %v911
    %939 = vmatprep.subr.mxu0 0.0
    %940 = vmatpush1.msra.mxu0 %v912
    %941 = vmatprep.subr.mxu0 0.0
    %942 = vmatpush1.msra.mxu0 %v913
    %943 = vmatprep.subr.mxu0 0.0
    %944 = vmatpush1.msra.mxu0 %v914
    %945 = vmatprep.subr.mxu0 0.0
    %946 = vmatpush1.msra.mxu0 %v915
    %947 = vmatprep.subr.mxu0 0.0
    %948 = vmatpush1.msra.mxu0 %v916
    %949 = vmatprep.subr.mxu0 0.0
    %950 = vmatpush1.msra.mxu0 %v917
    %951 = vmatprep.subr.mxu0 0.0
    %952 = vmatpush1.msra.mxu0 %v918
    %953 = vmatprep.subr.mxu0 0.0
    %954 = vmatpush1.msra.mxu0 %v919
    %955 = vmatprep.subr.mxu0 0.0
    %956 = vmatpush1.msra.mxu0 %v920
    %957 = vmatprep.subr.mxu0 0.0
    %958 = vmatpush1.msra.mxu0 %v921
    %959 = vmatprep.subr.mxu0 0.0
    %960 = vmatpush1.msra.mxu0 0.0
    %961 = vmatprep.subr.mxu0 0.0
    %962 = vmatpush1.msra.mxu0 0.0
    %963 = vmatprep.subr.mxu0 0.0
    %964 = vmatpush1.msra.mxu0 0.0
    %965 = vmatprep.subr.mxu0 0.0
    %966 = vmatpush1.msra.mxu0 0.0
    %967 = vmatprep.subr.mxu0 0.0
    %968 = vmatpush1.msra.mxu0 0.0
    %969 = vmatprep.subr.mxu0 0.0
    %970 = vmatpush1.msra.mxu0 0.0
    %971 = vmatprep.subr.mxu0 0.0
    %972 = vmatpush1.msra.mxu0 0.0
    %973 = vmatprep.subr.mxu0 0.0
    %974 = vmatpush1.msra.mxu0 0.0
    %975 = vmatprep.subr.mxu0 0.0
    %976 = vmatpush1.msra.mxu0 0.0
    %977 = vmatprep.subr.mxu0 0.0
    %978 = vmatpush1.msra.mxu0 0.0
    %979 = vmatprep.subr.mxu0 0.0
    %980 = vmatpush1.msra.mxu0 0.0
    %981 = vmatprep.subr.mxu0 0.0
    %982 = vmatpush1.msra.mxu0 0.0
    %983 = vmatprep.subr.mxu0 0.0
    %984 = vmatpush1.msra.mxu0 0.0
    %985 = vmatprep.subr.mxu0 0.0
    %986 = vmatpush1.msra.mxu0 0.0
    %987 = vmatprep.subr.mxu0 0.0
    %988 = vmatpush1.msra.mxu0 0.0
    %989 = vmatprep.subr.mxu0 0.0
    %990 = vmatpush1.msra.mxu0 0.0
    %991 = vmatprep.mubr.f32.mxu0 0.0
    %992 = vmatmul.mubr.f32.gmra.mrb[0].mxu0 %v903
    %v993 = vpop.f32.mrb[0].mxu0
    %v994 = vadd.f32 %v926, %v993
    %v995 = vpop.f32.mrb[0].mxu0
    %996 = vmatprep.mubr.f32.mxu0 0.0
    %997 = vmatmul.mubr.f32.gmra.mrb[0].mxu0 %v904
    %v998 = vpop.f32.mrb[0].mxu0
    %v999 = vadd.f32 %v926, %v998
    %v1000 = vpop.f32.mrb[0].mxu0
    %1001 = vmatprep.mubr.f32.mxu0 0.0
    %1002 = vmatmul.mubr.f32.gmra.mrb[0].mxu0 %v905
    %v1003 = vpop.f32.mrb[0].mxu0
    %v1004 = vadd.f32 %v926, %v1003
    %v1005 = vpop.f32.mrb[0].mxu0
    %1006 = vdwg.mxu0
    %vm1007 = vcmp.eq.s32.totalorder %v57, 0
    %v1008 = vsel %vm1007, %v994, 0.0
    %v1009 = vsel %vm1007, %v999, 0.0
    %v1010 = vsel %vm1007, %v1004, 0.0
    %1011 = vadd.xlane.f32.xlu0 %v1008
    %v1012 = vpop.xlane.xlu0 %1011
    %1013 = vadd.xlane.f32.xlu0 %v1009
    %v1014 = vpop.xlane.xlu0 %1013
    %1015 = vadd.xlane.f32.xlu0 %v1010
    %v1016 = vpop.xlane.xlu0 %1015
    %v1017 = vadd.f32 %v1014, %v1016
    %v1018 = vmul.f32 %v1017, 0.5
    %v1019 = vmul.f32 %v173, %v173
    %v1020 = vmul.f32 %v177, %v177
    %v1021 = vmul.f32 %v585, %v585
    %v1022 = vadd.f32 %v1019, %v1020
    %v1023 = vadd.f32 %v1022, %v1021
    %1024 = vadd.xlane.f32.xlu0 %v1023
    %v1025 = vpop.xlane.xlu0 %1024
    %v1026 = vmul.f32 %v171, %v171
    %v1027 = vmul.f32 %v179, %v179
    %1028 = vmatprep.subr.mxu0 %v1027
    %1029 = vmatpush1.xpose.msra.mxu0 %v1026
    %1030 = vmatprep.subr.mxu0 0.0
    %1031 = vmatpush1.xpose.msra.mxu0 0.0
    %1032 = vmatprep.subr.mxu0 0.0
    %1033 = vmatpush1.xpose.msra.mxu0 0.0
    %1034 = vmatprep.subr.mxu0 0.0
    %1035 = vmatpush1.xpose.msra.mxu0 0.0
    %1036 = vmatprep.subr.mxu0 0.0
    %1037 = vmatpush1.xpose.msra.mxu0 0.0
    %1038 = vmatprep.subr.mxu0 0.0
    %1039 = vmatpush1.xpose.msra.mxu0 0.0
    %1040 = vmatprep.subr.mxu0 0.0
    %1041 = vmatpush1.xpose.msra.mxu0 0.0
    %1042 = vmatprep.subr.mxu0 0.0
    %1043 = vmatpush1.xpose.msra.mxu0 0.0
    %1044 = vmatprep.subr.mxu0 0.0
    %1045 = vmatpush1.xpose.msra.mxu0 0.0
    %1046 = vmatprep.subr.mxu0 0.0
    %1047 = vmatpush1.xpose.msra.mxu0 0.0
    %1048 = vmatprep.subr.mxu0 0.0
    %1049 = vmatpush1.xpose.msra.mxu0 0.0
    %1050 = vmatprep.subr.mxu0 0.0
    %1051 = vmatpush1.xpose.msra.mxu0 0.0
    %1052 = vmatprep.subr.mxu0 0.0
    %1053 = vmatpush1.xpose.msra.mxu0 0.0
    %1054 = vmatprep.subr.mxu0 0.0
    %1055 = vmatpush1.xpose.msra.mxu0 0.0
    %1056 = vmatprep.subr.mxu0 0.0
    %1057 = vmatpush1.xpose.msra.mxu0 0.0
    %1058 = vmatprep.subr.mxu0 0.0
    %1059 = vmatpush1.xpose.msra.mxu0 0.0
    %1060 = vmatprep.subr.mxu0 0.0
    %1061 = vmatpush1.xpose.msra.mxu0 0.0
    %1062 = vmatprep.subr.mxu0 0.0
    %1063 = vmatpush1.xpose.msra.mxu0 0.0
    %1064 = vmatprep.subr.mxu0 0.0
    %1065 = vmatpush1.xpose.msra.mxu0 0.0
    %1066 = vmatprep.subr.mxu0 0.0
    %1067 = vmatpush1.xpose.msra.mxu0 0.0
    %1068 = vmatprep.subr.mxu0 0.0
    %1069 = vmatpush1.xpose.msra.mxu0 0.0
    %1070 = vmatprep.subr.mxu0 0.0
    %1071 = vmatpush1.xpose.msra.mxu0 0.0
    %1072 = vmatprep.subr.mxu0 0.0
    %1073 = vmatpush1.xpose.msra.mxu0 0.0
    %1074 = vmatprep.subr.mxu0 0.0
    %1075 = vmatpush1.xpose.msra.mxu0 0.0
    %1076 = vmatprep.subr.mxu0 0.0
    %1077 = vmatpush1.xpose.msra.mxu0 0.0
    %1078 = vmatprep.subr.mxu0 0.0
    %1079 = vmatpush1.xpose.msra.mxu0 0.0
    %1080 = vmatprep.subr.mxu0 0.0
    %1081 = vmatpush1.xpose.msra.mxu0 0.0
    %1082 = vmatprep.subr.mxu0 0.0
    %1083 = vmatpush1.xpose.msra.mxu0 0.0
    %1084 = vmatprep.subr.mxu0 0.0
    %1085 = vmatpush1.xpose.msra.mxu0 0.0
    %1086 = vmatprep.subr.mxu0 0.0
    %1087 = vmatpush1.xpose.msra.mxu0 0.0
    %1088 = vmatprep.subr.mxu0 0.0
    %1089 = vmatpush1.xpose.msra.mxu0 0.0
    %1090 = vmatprep.subr.mxu0 0.0
    %1091 = vmatpush1.xpose.msra.mxu0 0.0
    %1092 = vmatprep.mubr.f32.mxu0 1.0
    %1093 = vmatmul.mubr.f32.gmra.mrb[0].mxu0 1.0
    %v1094 = vpop.f32.mrb[0].mxu0
    %v1095 = vadd.f32 0.0, %v1094
    %v1096 = vpop.f32.mrb[0].mxu0
    %1097 = vdwg.mxu0
    %1098 = vmatprep.subr.mxu0 0.0
    %1099 = vmatpush1.xpose.msra.mxu0 %v1021
    %1100 = vmatprep.subr.mxu0 0.0
    %1101 = vmatpush1.xpose.msra.mxu0 0.0
    %1102 = vmatprep.subr.mxu0 0.0
    %1103 = vmatpush1.xpose.msra.mxu0 0.0
    %1104 = vmatprep.subr.mxu0 0.0
    %1105 = vmatpush1.xpose.msra.mxu0 0.0
    %1106 = vmatprep.subr.mxu0 0.0
    %1107 = vmatpush1.xpose.msra.mxu0 0.0
    %1108 = vmatprep.subr.mxu0 0.0
    %1109 = vmatpush1.xpose.msra.mxu0 0.0
    %1110 = vmatprep.subr.mxu0 0.0
    %1111 = vmatpush1.xpose.msra.mxu0 0.0
    %1112 = vmatprep.subr.mxu0 0.0
    %1113 = vmatpush1.xpose.msra.mxu0 0.0
    %1114 = vmatprep.subr.mxu0 0.0
    %1115 = vmatpush1.xpose.msra.mxu0 0.0
    %1116 = vmatprep.subr.mxu0 0.0
    %1117 = vmatpush1.xpose.msra.mxu0 0.0
    %1118 = vmatprep.subr.mxu0 0.0
    %1119 = vmatpush1.xpose.msra.mxu0 0.0
    %1120 = vmatprep.subr.mxu0 0.0
    %1121 = vmatpush1.xpose.msra.mxu0 0.0
    %1122 = vmatprep.subr.mxu0 0.0
    %1123 = vmatpush1.xpose.msra.mxu0 0.0
    %1124 = vmatprep.subr.mxu0 0.0
    %1125 = vmatpush1.xpose.msra.mxu0 0.0
    %1126 = vmatprep.subr.mxu0 0.0
    %1127 = vmatpush1.xpose.msra.mxu0 0.0
    %1128 = vmatprep.subr.mxu0 0.0
    %1129 = vmatpush1.xpose.msra.mxu0 0.0
    %1130 = vmatprep.subr.mxu0 0.0
    %1131 = vmatpush1.xpose.msra.mxu0 0.0
    %1132 = vmatprep.subr.mxu0 0.0
    %1133 = vmatpush1.xpose.msra.mxu0 0.0
    %1134 = vmatprep.subr.mxu0 0.0
    %1135 = vmatpush1.xpose.msra.mxu0 0.0
    %1136 = vmatprep.subr.mxu0 0.0
    %1137 = vmatpush1.xpose.msra.mxu0 0.0
    %1138 = vmatprep.subr.mxu0 0.0
    %1139 = vmatpush1.xpose.msra.mxu0 0.0
    %1140 = vmatprep.subr.mxu0 0.0
    %1141 = vmatpush1.xpose.msra.mxu0 0.0
    %1142 = vmatprep.subr.mxu0 0.0
    %1143 = vmatpush1.xpose.msra.mxu0 0.0
    %1144 = vmatprep.subr.mxu0 0.0
    %1145 = vmatpush1.xpose.msra.mxu0 0.0
    %1146 = vmatprep.subr.mxu0 0.0
    %1147 = vmatpush1.xpose.msra.mxu0 0.0
    %1148 = vmatprep.subr.mxu0 0.0
    %1149 = vmatpush1.xpose.msra.mxu0 0.0
    %1150 = vmatprep.subr.mxu0 0.0
    %1151 = vmatpush1.xpose.msra.mxu0 0.0
    %1152 = vmatprep.subr.mxu0 0.0
    %1153 = vmatpush1.xpose.msra.mxu0 0.0
    %1154 = vmatprep.subr.mxu0 0.0
    %1155 = vmatpush1.xpose.msra.mxu0 0.0
    %1156 = vmatprep.subr.mxu0 0.0
    %1157 = vmatpush1.xpose.msra.mxu0 0.0
    %1158 = vmatprep.subr.mxu0 0.0
    %1159 = vmatpush1.xpose.msra.mxu0 0.0
    %1160 = vmatprep.subr.mxu0 0.0
    %1161 = vmatpush1.xpose.msra.mxu0 0.0
    %1162 = vmatprep.mubr.f32.mxu0 0.0
    %1163 = vmatmul.mubr.f32.gmra.mrb[0].mxu0 1.0
    %v1164 = vpop.f32.mrb[0].mxu0
    %v1165 = vadd.f32 %v1095, %v1164
    %v1166 = vpop.f32.mrb[0].mxu0
    %1167 = vdwg.mxu0
    %1168 = vmatprep.subr.mxu0 %v179
    %1169 = vmatpush1.xpose.msra.mxu0 %v171
    %1170 = vmatprep.subr.mxu0 0.0
    %1171 = vmatpush1.xpose.msra.mxu0 0.0
    %1172 = vmatprep.subr.mxu0 0.0
    %1173 = vmatpush1.xpose.msra.mxu0 0.0
    %1174 = vmatprep.subr.mxu0 0.0
    %1175 = vmatpush1.xpose.msra.mxu0 0.0
    %1176 = vmatprep.subr.mxu0 0.0
    %1177 = vmatpush1.xpose.msra.mxu0 0.0
    %1178 = vmatprep.subr.mxu0 0.0
    %1179 = vmatpush1.xpose.msra.mxu0 0.0
    %1180 = vmatprep.subr.mxu0 0.0
    %1181 = vmatpush1.xpose.msra.mxu0 0.0
    %1182 = vmatprep.subr.mxu0 0.0
    %1183 = vmatpush1.xpose.msra.mxu0 0.0
    %1184 = vmatprep.subr.mxu0 0.0
    %1185 = vmatpush1.xpose.msra.mxu0 0.0
    %1186 = vmatprep.subr.mxu0 0.0
    %1187 = vmatpush1.xpose.msra.mxu0 0.0
    %1188 = vmatprep.subr.mxu0 0.0
    %1189 = vmatpush1.xpose.msra.mxu0 0.0
    %1190 = vmatprep.subr.mxu0 0.0
    %1191 = vmatpush1.xpose.msra.mxu0 0.0
    %1192 = vmatprep.subr.mxu0 0.0
    %1193 = vmatpush1.xpose.msra.mxu0 0.0
    %1194 = vmatprep.subr.mxu0 0.0
    %1195 = vmatpush1.xpose.msra.mxu0 0.0
    %1196 = vmatprep.subr.mxu0 0.0
    %1197 = vmatpush1.xpose.msra.mxu0 0.0
    %1198 = vmatprep.subr.mxu0 0.0
    %1199 = vmatpush1.xpose.msra.mxu0 0.0
    %1200 = vmatprep.subr.mxu0 0.0
    %1201 = vmatpush1.xpose.msra.mxu0 0.0
    %1202 = vmatprep.subr.mxu0 0.0
    %1203 = vmatpush1.xpose.msra.mxu0 0.0
    %1204 = vmatprep.subr.mxu0 0.0
    %1205 = vmatpush1.xpose.msra.mxu0 0.0
    %1206 = vmatprep.subr.mxu0 0.0
    %1207 = vmatpush1.xpose.msra.mxu0 0.0
    %1208 = vmatprep.subr.mxu0 0.0
    %1209 = vmatpush1.xpose.msra.mxu0 0.0
    %1210 = vmatprep.subr.mxu0 0.0
    %1211 = vmatpush1.xpose.msra.mxu0 0.0
    %1212 = vmatprep.subr.mxu0 0.0
    %1213 = vmatpush1.xpose.msra.mxu0 0.0
    %1214 = vmatprep.subr.mxu0 0.0
    %1215 = vmatpush1.xpose.msra.mxu0 0.0
    %1216 = vmatprep.subr.mxu0 0.0
    %1217 = vmatpush1.xpose.msra.mxu0 0.0
    %1218 = vmatprep.subr.mxu0 0.0
    %1219 = vmatpush1.xpose.msra.mxu0 0.0
    %1220 = vmatprep.subr.mxu0 0.0
    %1221 = vmatpush1.xpose.msra.mxu0 0.0
    %1222 = vmatprep.subr.mxu0 0.0
    %1223 = vmatpush1.xpose.msra.mxu0 0.0
    %1224 = vmatprep.subr.mxu0 0.0
    %1225 = vmatpush1.xpose.msra.mxu0 0.0
    %1226 = vmatprep.subr.mxu0 0.0
    %1227 = vmatpush1.xpose.msra.mxu0 0.0
    %1228 = vmatprep.subr.mxu0 0.0
    %1229 = vmatpush1.xpose.msra.mxu0 0.0
    %1230 = vmatprep.subr.mxu0 0.0
    %1231 = vmatpush1.xpose.msra.mxu0 0.0
    %1232 = vmatprep.mubr.f32.mxu0 %v177
    %1233 = vmatmul.mubr.f32.gmra.mrb[0].mxu0 %v173
    %v1234 = vpop.f32.mrb[0].mxu0
    %v1235 = vadd.f32 0.0, %v1234
    %v1236 = vpop.f32.mrb[0].mxu0
    %1237 = vdwg.mxu0
    %1238 = vmatprep.subr.mxu0 0.0
    %1239 = vmatpush1.xpose.msra.mxu0 %v585
    %1240 = vmatprep.subr.mxu0 0.0
    %1241 = vmatpush1.xpose.msra.mxu0 0.0
    %1242 = vmatprep.subr.mxu0 0.0
    %1243 = vmatpush1.xpose.msra.mxu0 0.0
    %1244 = vmatprep.subr.mxu0 0.0
    %1245 = vmatpush1.xpose.msra.mxu0 0.0
    %1246 = vmatprep.subr.mxu0 0.0
    %1247 = vmatpush1.xpose.msra.mxu0 0.0
    %1248 = vmatprep.subr.mxu0 0.0
    %1249 = vmatpush1.xpose.msra.mxu0 0.0
    %1250 = vmatprep.subr.mxu0 0.0
    %1251 = vmatpush1.xpose.msra.mxu0 0.0
    %1252 = vmatprep.subr.mxu0 0.0
    %1253 = vmatpush1.xpose.msra.mxu0 0.0
    %1254 = vmatprep.subr.mxu0 0.0
    %1255 = vmatpush1.xpose.msra.mxu0 0.0
    %1256 = vmatprep.subr.mxu0 0.0
    %1257 = vmatpush1.xpose.msra.mxu0 0.0
    %1258 = vmatprep.subr.mxu0 0.0
    %1259 = vmatpush1.xpose.msra.mxu0 0.0
    %1260 = vmatprep.subr.mxu0 0.0
    %1261 = vmatpush1.xpose.msra.mxu0 0.0
    %1262 = vmatprep.subr.mxu0 0.0
    %1263 = vmatpush1.xpose.msra.mxu0 0.0
    %1264 = vmatprep.subr.mxu0 0.0
    %1265 = vmatpush1.xpose.msra.mxu0 0.0
    %1266 = vmatprep.subr.mxu0 0.0
    %1267 = vmatpush1.xpose.msra.mxu0 0.0
    %1268 = vmatprep.subr.mxu0 0.0
    %1269 = vmatpush1.xpose.msra.mxu0 0.0
    %1270 = vmatprep.subr.mxu0 0.0
    %1271 = vmatpush1.xpose.msra.mxu0 0.0
    %1272 = vmatprep.subr.mxu0 0.0
    %1273 = vmatpush1.xpose.msra.mxu0 0.0
    %1274 = vmatprep.subr.mxu0 0.0
    %1275 = vmatpush1.xpose.msra.mxu0 0.0
    %1276 = vmatprep.subr.mxu0 0.0
    %1277 = vmatpush1.xpose.msra.mxu0 0.0
    %1278 = vmatprep.subr.mxu0 0.0
    %1279 = vmatpush1.xpose.msra.mxu0 0.0
    %1280 = vmatprep.subr.mxu0 0.0
    %1281 = vmatpush1.xpose.msra.mxu0 0.0
    %1282 = vmatprep.subr.mxu0 0.0
    %1283 = vmatpush1.xpose.msra.mxu0 0.0
    %1284 = vmatprep.subr.mxu0 0.0
    %1285 = vmatpush1.xpose.msra.mxu0 0.0
    %1286 = vmatprep.subr.mxu0 0.0
    %1287 = vmatpush1.xpose.msra.mxu0 0.0
    %1288 = vmatprep.subr.mxu0 0.0
    %1289 = vmatpush1.xpose.msra.mxu0 0.0
    %1290 = vmatprep.subr.mxu0 0.0
    %1291 = vmatpush1.xpose.msra.mxu0 0.0
    %1292 = vmatprep.subr.mxu0 0.0
    %1293 = vmatpush1.xpose.msra.mxu0 0.0
    %1294 = vmatprep.subr.mxu0 0.0
    %1295 = vmatpush1.xpose.msra.mxu0 0.0
    %1296 = vmatprep.subr.mxu0 0.0
    %1297 = vmatpush1.xpose.msra.mxu0 0.0
    %1298 = vmatprep.subr.mxu0 0.0
    %1299 = vmatpush1.xpose.msra.mxu0 0.0
    %1300 = vmatprep.subr.mxu0 0.0
    %1301 = vmatpush1.xpose.msra.mxu0 0.0
    %1302 = vmatprep.mubr.f32.mxu0 0.0
    %1303 = vmatmul.mubr.f32.gmra.mrb[0].mxu0 %v585
    %v1304 = vpop.f32.mrb[0].mxu0
    %v1305 = vadd.f32 %v1235, %v1304
    %v1306 = vpop.f32.mrb[0].mxu0
    %1307 = vdwg.mxu0
    %v1308 = vmax.f32 %v1025, 1e-12
    %v1309 = vrsqrt.pop %v1308
    %v1310 = vmul.f32 %v1305, %v1309
    %v1311 = vmax.f32 %v1165, 1e-12
    %v1312 = vrsqrt.pop %v1311
    %v1313 = vlaneseq
    %v1314 = vshrl.u32 %v1313, 7
    %v1315 = vsub.s32 0, %v1314
    %v1316 = vrot.slane %v1312, %v1315
    %v1317 = vmul.f32 %v1310, %v1316
    %vm1318 = vcmask 64512
    %v1319 = vsel %vm1318, %v1317, -inf
    %1320 = vmax.xlane.f32.xlu0 %v1319
    %v1321 = vpop.xlane.xlu0 %1320
    %v1322 = vsub.f32 %v1317, %v1321
    %v1323 = vmul.f32 %v1322, 1.442695
    %v1324 = vpow.pop %v1323
    %v1325 = vsel %vm1318, %v1324, 0.0
    %1326 = vadd.xlane.f32.xlu0 %v1325
    %v1327 = vpop.xlane.xlu0 %1326
    %v1328 = vlog2.pop %v1327
    %v1329 = vmul.f32 %v1328, 0.6931472
    %vm1330 = vcmp.eq.s32.totalorder %v59, %v57
    %v1331 = vsel %vm1330, %v1322, 0.0
    %v1332 = vsel %vm1318, %v1331, 0.0
    %1333 = vadd.xlane.f32.xlu0 %v1332
    %v1334 = vpop.xlane.xlu0 %1333
    %v1335 = vsub.f32 %v1329, %v1334
    %vm1336 = vcmask 7168
    %v1337 = vsel %vm1336, %v1335, 0.0
    %1338 = vadd.xlane.f32.xlu0 %v1337
    %v1339 = vpop.xlane.xlu0 %1338
    %v1340 = vrot.slane %v1339, 4
    %v1341 = vadd.f32 %v1339, %v1340
    %v1342 = vrot.slane %v1341, 2
    %v1343 = vadd.f32 %v1341, %v1342
    %v1344 = vrot.slane %v1343, 1
    %v1345 = vadd.f32 %v1343, %v1344
    %s1346 = vtos %v1345
    %s1347 = smul.f32 %s1346, 0.125
    %v1348 = vsel %vm1007, %v1012, 0.0
    %vm1349 = vcmp.eq.s32.totalorder %v57, 1
    %v1350 = vsel %vm1349, %v1018, 0.0
    %v1351 = vadd.f32 %v1348, %v1350
    %vm1352 = vcmp.eq.s32.totalorder %v57, 2
    %vm1353 = vcmp.eq.s32.totalorder %v59, 0
    %vm1354 = vmand %vm1352, %vm1353
    %v1355 = vstv %s1347
    %v1356 = vsel %vm1354, %v1355, 0.0
    %v1357 = vadd.f32 %v1351, %v1356
    %1358 = vst [vmem:[#allocation8] sm:$0xff] %v1357
    // Predicated region
    $region26: #{tpu_custom_call.1} parent=1 // pred_check
      _
    $region27: #{tpu_custom_call.1} parent=1 // pred_check_branch
      %1360 = sbr.rel (0) target = $region29
    $region28: #{tpu_custom_call.1} parent=1 // pred_region
      %s1362 = ssub.s32 128, 128
      %1363 = vsyncadd [#allocation4], %s1362
      %s1365 = sshll.u32 [#allocation8], 4
      %s1366 = int_to_ptr.vmem [resolvable:$true] %s1365
      %1368 = dma.vmem_to_hbm [thread:$0]  %s1366, 128, %s3, [#allocation4]
    $region29: #{tpu_custom_call.1} parent=1 // pred_fallthru
      _
    // Predicated region
    $region30: #{tpu_custom_call.1} parent=1 // pred_check
      _
    $region31: #{tpu_custom_call.1} parent=1 // pred_check_branch
      %1370 = sbr.rel (0) target = $region33
    $region32: #{tpu_custom_call.1} parent=1 // pred_region
      %1371 = dma.done [#allocation4], 128
    $region33: #{tpu_custom_call.1} parent=1 // pred_fallthru
      _
    %1372 = vsyncpa [#allocation3], 1
    %1373 = vsyncpa [#allocation6], 1
    %1374 = vsyncpa [#allocation4], 1

</llo_original>
